<compile_context>
chip_gen: v7x
topology: tpu7x:2x2x1
jax: 0.10.0
libtpu: 0.0.40
codegen_flags: <defaults>
</compile_context>

<pallas_src>
import functools
import math

import jax
import jax.numpy as jnp
from jax.experimental import pallas as pl
from jax.experimental.pallas import tpu as pltpu


def _attn_kernel(q_ref, k_ref, v_ref, mask_ref, u_ref, o_ref, *, scale, dropout_p):
    # One grid step = one batch element, all heads resident in VMEM.
    q = q_ref[0]          # (H, Lq, D)
    k = k_ref[0]          # (H, M,  D)
    v = v_ref[0]          # (H, M,  D)
    mask = mask_ref[0]    # (H, M)  -- reinterpreted as (Lq, D), broadcast over heads (Lq==H, D==M)
    u = u_ref[0]          # (H, Lq, M) uniforms in [0, 1) for dropout

    # scores: batched over heads, contraction over D (no explicit k.T / relayout).
    s = jnp.einsum("hqd,hkd->hqk", q, k, preferred_element_type=jnp.float32)
    s = s * (1.0 / scale)

    # numerically-stable softmax over the key axis
    s = s - jnp.max(s, axis=-1, keepdims=True)
    e = jnp.exp(s)
    probs = e / jnp.sum(e, axis=-1, keepdims=True)

    # dropout with F.dropout training semantics: keep w.p. (1-p), rescale kept values by 1/(1-p)
    keep = u >= jnp.float32(dropout_p)
    dq = jnp.where(keep, probs * (1.0 / (1.0 - dropout_p)), 0.0)

    # output = dropout_qk @ value (batched over heads), then elementwise mask
    out = jnp.einsum("hqk,hkd->hqd", dq, v, preferred_element_type=jnp.float32)
    o_ref[0] = (out * mask[None, :, :]).astype(o_ref.dtype)


def masked_attention(query, key, value, attention_mask, *, dropout_p=0.1, rng_key=None):
    B, H, Lq, D = query.shape
    Bk, Hk, M, Dk = key.shape
    assert (Bk, Hk, Dk) == (B, H, D)
    assert value.shape == key.shape
    assert attention_mask.shape == (B, H, M)
    # required for `output * mask.unsqueeze(1)` to broadcast (same requirement in PyTorch)
    assert Lq == H and D == M, "mask broadcast requires Lq == num_heads and head_dim == mask_seq_len"

    # scale_factor = sqrt(num_heads * mask_sequence_length), as in the module's __init__
    scale = float(math.sqrt(H * M))

    if rng_key is None:
        rng_key = jax.random.PRNGKey(0)
    # TODO(synk): F.dropout uses torch's RNG stream; here the Bernoulli(1-p) keep-mask is derived
    # from JAX-generated uniforms passed into the kernel (same keep / 1/(1-p) rescale semantics).
    dropout_uniform = jax.random.uniform(rng_key, (B, H, Lq, M), dtype=jnp.float32)

    kernel = functools.partial(_attn_kernel, scale=scale, dropout_p=float(dropout_p))

    return pl.pallas_call(
        kernel,
        out_shape=jax.ShapeDtypeStruct((B, H, Lq, D), jnp.float32),
        grid=(B,),
        in_specs=[
            pl.BlockSpec((1, H, Lq, D), lambda b: (b, 0, 0, 0)),   # query
            pl.BlockSpec((1, H, M, D), lambda b: (b, 0, 0, 0)),    # key
            pl.BlockSpec((1, H, M, D), lambda b: (b, 0, 0, 0)),    # value
            pl.BlockSpec((1, H, M), lambda b: (b, 0, 0)),          # attention_mask
            pl.BlockSpec((1, H, Lq, M), lambda b: (b, 0, 0, 0)),   # dropout uniforms
        ],
        out_specs=pl.BlockSpec((1, H, Lq, D), lambda b: (b, 0, 0, 0)),
        compiler_params=pltpu.CompilerParams(
            dimension_semantics=("parallel",),
        ),
    )(query, key, value, attention_mask, dropout_uniform)


if __name__ == "__main__":
    # Small shapes consistent with the module's forward (mask broadcast requires Lq==H, D==M):
    # B=2 batches, H=8 heads, key/value seq M=64, head dim D=64, query seq Lq=H=8.
    B, H, M, D = 2, 8, 64, 64
    Lq = H

    rng = jax.random.PRNGKey(0)
    kq, kk, kv, km, kd = jax.random.split(rng, 5)
    query = jax.random.normal(kq, (B, H, Lq, D), dtype=jnp.float32)
    key = jax.random.normal(kk, (B, H, M, D), dtype=jnp.float32)
    value = jax.random.normal(kv, (B, H, M, D), dtype=jnp.float32)
    attention_mask = jax.random.normal(km, (B, H, M), dtype=jnp.float32)

    out = masked_attention(query, key, value, attention_mask, dropout_p=0.1, rng_key=kd)
    jax.block_until_ready(out)
    assert out.shape == (B, H, Lq, D)
    assert bool(jnp.all(jnp.isfinite(out)))
    print("KERNEL_OK")
</pallas_src>

<mosaic_0001>
module attributes {stable_mosaic.version = 11 : i64} {
  func.func @_attn_kernel(%arg0: i32, %arg1: memref<1x8x8x64xf32, #tpu.memory_space<vmem>>, %arg2: memref<1x8x64x64xf32, #tpu.memory_space<vmem>>, %arg3: memref<1x8x64x64xf32, #tpu.memory_space<vmem>>, %arg4: memref<1x8x64xf32, #tpu.memory_space<vmem>>, %arg5: memref<1x8x8x64xf32, #tpu.memory_space<vmem>>, %arg6: memref<1x8x8x64xf32, #tpu.memory_space<vmem>>) attributes {dimension_semantics = [#tpu.dimension_semantics<parallel>], iteration_bounds = array<i64: 2>, scalar_prefetch = 0 : i64, scratch_operands = 0 : i64, tpu.core_type = #tpu.core_type<tc>, window_params = [{transform_indices = @transform_0, window_bounds = array<i64: 1, 8, 8, 64>}, {transform_indices = @transform_1, window_bounds = array<i64: 1, 8, 64, 64>}, {transform_indices = @transform_2, window_bounds = array<i64: 1, 8, 64, 64>}, {transform_indices = @transform_3, window_bounds = array<i64: 1, 8, 64>}, {transform_indices = @transform_4, window_bounds = array<i64: 1, 8, 8, 64>}, {transform_indices = @transform_5, window_bounds = array<i64: 1, 8, 8, 64>}]} {
    %c0 = arith.constant 0 : index
    %c0_0 = arith.constant 0 : index
    %c0_1 = arith.constant 0 : index
    %c0_2 = arith.constant 0 : index
    %0 = vector.load %arg1[%c0, %c0_0, %c0_1, %c0_2] : memref<1x8x8x64xf32, #tpu.memory_space<vmem>>, vector<1x8x8x64xf32>
    %1 = vector.shape_cast %0 : vector<1x8x8x64xf32> to vector<8x8x64xf32>
    %c0_3 = arith.constant 0 : index
    %c0_4 = arith.constant 0 : index
    %c0_5 = arith.constant 0 : index
    %c0_6 = arith.constant 0 : index
    %2 = vector.load %arg2[%c0_3, %c0_4, %c0_5, %c0_6] : memref<1x8x64x64xf32, #tpu.memory_space<vmem>>, vector<1x8x64x64xf32>
    %3 = vector.shape_cast %2 : vector<1x8x64x64xf32> to vector<8x64x64xf32>
    %c0_7 = arith.constant 0 : index
    %c0_8 = arith.constant 0 : index
    %c0_9 = arith.constant 0 : index
    %c0_10 = arith.constant 0 : index
    %4 = vector.load %arg3[%c0_7, %c0_8, %c0_9, %c0_10] : memref<1x8x64x64xf32, #tpu.memory_space<vmem>>, vector<1x8x64x64xf32>
    %5 = vector.shape_cast %4 : vector<1x8x64x64xf32> to vector<8x64x64xf32>
    %c0_11 = arith.constant 0 : index
    %c0_12 = arith.constant 0 : index
    %c0_13 = arith.constant 0 : index
    %6 = vector.load %arg4[%c0_11, %c0_12, %c0_13] : memref<1x8x64xf32, #tpu.memory_space<vmem>>, vector<1x8x64xf32>
    %7 = vector.shape_cast %6 : vector<1x8x64xf32> to vector<8x64xf32>
    %c0_14 = arith.constant 0 : index
    %c0_15 = arith.constant 0 : index
    %c0_16 = arith.constant 0 : index
    %c0_17 = arith.constant 0 : index
    %8 = vector.load %arg5[%c0_14, %c0_15, %c0_16, %c0_17] : memref<1x8x8x64xf32, #tpu.memory_space<vmem>>, vector<1x8x8x64xf32>
    %9 = vector.shape_cast %8 : vector<1x8x8x64xf32> to vector<8x8x64xf32>
    "tpu.trace_start"() <{level = 10 : i32, message = "hqd,hkd->hqk"}> : () -> ()
    %cst = arith.constant dense<0.000000e+00> : vector<8x8x64xf32>
    %10 = tpu.matmul %1, %3, %cst {dimension_numbers = #tpu.dot_dimension_numbers<[2], [2], [1], [1], [0, 0, 0, 1, 1, 1], [0], [0]>} : vector<8x8x64xf32>, vector<8x64x64xf32>, vector<8x8x64xf32> -> vector<8x8x64xf32>
    "tpu.trace_stop"() : () -> ()
    %cst_18 = arith.constant 0.0441941731 : f32
    %11 = vector.broadcast %cst_18 : f32 to vector<8x8x64xf32>
    %12 = arith.mulf %10, %11 : vector<8x8x64xf32>
    %cst_19 = arith.constant dense<0xFF800000> : vector<8x8xf32>
    %13 = vector.multi_reduction <maximumf>, %12, %cst_19 [2] : vector<8x8x64xf32> to vector<8x8xf32>
    %14 = vector.shape_cast %13 : vector<8x8xf32> to vector<8x8x1xf32>
    %15 = vector.broadcast %14 : vector<8x8x1xf32> to vector<8x8x64xf32>
    %16 = arith.subf %12, %15 : vector<8x8x64xf32>
    %17 = math.exp %16 : vector<8x8x64xf32>
    %cst_20 = arith.constant dense<0.000000e+00> : vector<8x8xf32>
    %18 = vector.multi_reduction <add>, %17, %cst_20 [2] : vector<8x8x64xf32> to vector<8x8xf32>
    %19 = vector.shape_cast %18 : vector<8x8xf32> to vector<8x8x1xf32>
    %20 = vector.broadcast %19 : vector<8x8x1xf32> to vector<8x8x64xf32>
    %21 = arith.divf %17, %20 : vector<8x8x64xf32>
    %cst_21 = arith.constant 1.000000e-01 : f32
    %22 = vector.broadcast %cst_21 : f32 to vector<8x8x64xf32>
    %23 = arith.cmpf oge, %9, %22 : vector<8x8x64xf32>
    %cst_22 = arith.constant 1.11111116 : f32
    %24 = vector.broadcast %cst_22 : f32 to vector<8x8x64xf32>
    %25 = arith.mulf %21, %24 : vector<8x8x64xf32>
    %cst_23 = arith.constant 0.000000e+00 : f32
    %26 = vector.broadcast %cst_23 : f32 to vector<8x8x64xf32>
    %27 = arith.select %23, %25, %26 : vector<8x8x64xi1>, vector<8x8x64xf32>
    "tpu.trace_start"() <{level = 10 : i32, message = "hqk,hkd->hqd"}> : () -> ()
    %cst_24 = arith.constant dense<0.000000e+00> : vector<8x8x64xf32>
    %28 = tpu.matmul %27, %5, %cst_24 {dimension_numbers = #tpu.dot_dimension_numbers<[2], [1], [1], [2], [0, 0, 0, 1, 1, 2], [0], [0]>} : vector<8x8x64xf32>, vector<8x64x64xf32>, vector<8x8x64xf32> -> vector<8x8x64xf32>
    "tpu.trace_stop"() : () -> ()
    %29 = vector.shape_cast %7 : vector<8x64xf32> to vector<1x8x64xf32>
    %30 = vector.broadcast %29 : vector<1x8x64xf32> to vector<8x8x64xf32>
    %31 = arith.mulf %28, %30 : vector<8x8x64xf32>
    %c0_25 = arith.constant 0 : index
    %c0_26 = arith.constant 0 : index
    %c0_27 = arith.constant 0 : index
    %c0_28 = arith.constant 0 : index
    %32 = vector.load %arg6[%c0_25, %c0_26, %c0_27, %c0_28] : memref<1x8x8x64xf32, #tpu.memory_space<vmem>>, vector<1x8x8x64xf32>
    %33 = vector.shape_cast %32 : vector<1x8x8x64xf32> to vector<8x8x64xf32>
    %34 = vector.shape_cast %31 : vector<8x8x64xf32> to vector<1x8x8x64xf32>
    tpu.vector_store %arg6[%c0_25, %c0_26, %c0_27, %c0_28], %34 {strides = array<i32>} : memref<1x8x8x64xf32, #tpu.memory_space<vmem>>, vector<1x8x8x64xf32>,
    return
  }
  func.func @transform_0(%arg0: i32) -> (i32, i32, i32, i32) {
    %c0_i32 = arith.constant 0 : i32
    %c0_i32_0 = arith.constant 0 : i32
    %c0_i32_1 = arith.constant 0 : i32
    %c0_i32_2 = arith.constant 0 : i32
    return %arg0, %c0_i32, %c0_i32_0, %c0_i32_1 : i32, i32, i32, i32
  }
  func.func @transform_1(%arg0: i32) -> (i32, i32, i32, i32) {
    %c0_i32 = arith.constant 0 : i32
    %c0_i32_0 = arith.constant 0 : i32
    %c0_i32_1 = arith.constant 0 : i32
    %c0_i32_2 = arith.constant 0 : i32
    return %arg0, %c0_i32, %c0_i32_0, %c0_i32_1 : i32, i32, i32, i32
  }
  func.func @transform_2(%arg0: i32) -> (i32, i32, i32, i32) {
    %c0_i32 = arith.constant 0 : i32
    %c0_i32_0 = arith.constant 0 : i32
    %c0_i32_1 = arith.constant 0 : i32
    %c0_i32_2 = arith.constant 0 : i32
    return %arg0, %c0_i32, %c0_i32_0, %c0_i32_1 : i32, i32, i32, i32
  }
  func.func @transform_3(%arg0: i32) -> (i32, i32, i32) {
    %c0_i32 = arith.constant 0 : i32
    %c0_i32_0 = arith.constant 0 : i32
    %c0_i32_1 = arith.constant 0 : i32
    return %arg0, %c0_i32, %c0_i32_0 : i32, i32, i32
  }
  func.func @transform_4(%arg0: i32) -> (i32, i32, i32, i32) {
    %c0_i32 = arith.constant 0 : i32
    %c0_i32_0 = arith.constant 0 : i32
    %c0_i32_1 = arith.constant 0 : i32
    %c0_i32_2 = arith.constant 0 : i32
    return %arg0, %c0_i32, %c0_i32_0, %c0_i32_1 : i32, i32, i32, i32
  }
  func.func @transform_5(%arg0: i32) -> (i32, i32, i32, i32) {
    %c0_i32 = arith.constant 0 : i32
    %c0_i32_0 = arith.constant 0 : i32
    %c0_i32_1 = arith.constant 0 : i32
    %c0_i32_2 = arith.constant 0 : i32
    return %arg0, %c0_i32, %c0_i32_0, %c0_i32_1 : i32, i32, i32, i32
  }
}

</mosaic_0001>

<llo_original>
// kernel: tpu_custom_call.1
$region0: #{tpu_custom_call.1}
  #allocation0 [shape = 'u32[]', space=smem, size = 0x4, offset = 0x4, fixed_abs, tag = 'smem constant byte address 0x4 - core index']
  #allocation1 [shape = 'u32[144,128]{1,0:T(1,128)}', space=vmem, size = 0x12000, scoped, tag = 'internal scratch']
  %s0 = inlined_call_operand.hbm [shape: f32[2,8,8,64], index: 0, kind: input, shape index: {}]
  %s1 = inlined_call_operand.hbm [shape: f32[2,8,64,64], index: 1, kind: input, shape index: {}]
  %s2 = inlined_call_operand.hbm [shape: f32[2,8,64,64], index: 2, kind: input, shape index: {}]
  %s3 = inlined_call_operand.hbm [shape: f32[2,8,64], index: 3, kind: input, shape index: {}]
  %s4 = inlined_call_operand.hbm [shape: f32[2,8,8,64], index: 4, kind: input, shape index: {}]
  %s5 = inlined_call_operand.hbm [shape: f32[2,8,8,64], index: 5, kind: output, shape index: {}]
  %s6 = sld [smem:[#allocation0]]
  $region73: #{tpu_custom_call.1} parent=0
    _
  %s8 = ssub.s32 1, %s6
  %s9 = scalar_select 0, %s8, %s6
  $region1: #{tpu_custom_call.1} parent=0
    #allocation2 [shape = 'u8[65536]{0}', space=vmem, size = 0x10000, scoped, tag = 'input window, operand 0']
    #allocation3 [shape = 's32[2]{0}', space=sflag, size = 0x8, scoped, tag = 'scoped memory for tpu_custom_call.1']
    #allocation4 [shape = 's32[2]{0}', space=sflag, size = 0x8, scoped, tag = 'scoped memory for tpu_custom_call.1']
    #allocation5 [shape = 'u8[524288]{0}', space=vmem, size = 0x80000, scoped, tag = 'input window, operand 1']
    #allocation6 [shape = 's32[2]{0}', space=sflag, size = 0x8, scoped, tag = 'scoped memory for tpu_custom_call.1']
    #allocation7 [shape = 'u8[524288]{0}', space=vmem, size = 0x80000, scoped, tag = 'input window, operand 2']
    #allocation8 [shape = 'u8[8192]{0}', space=vmem, size = 0x2000, scoped, tag = 'input window, operand 3']
    #allocation9 [shape = 's32[2]{0}', space=sflag, size = 0x8, scoped, tag = 'scoped memory for tpu_custom_call.1']
    #allocation10 [shape = 'u8[65536]{0}', space=vmem, size = 0x10000, scoped, tag = 'input window, operand 4']
    #allocation11 [shape = 'u8[65536]{0}', space=vmem, size = 0x10000, scoped, tag = 'output window, operand 0']
    %10 = vsyncpa [#allocation3], 0
    %s11 = scalar_lea.sflag [#allocation3], 1
    %12 = vsyncpa %s11, 0
    %13 = vsyncpa [#allocation6], 0
    %s14 = scalar_lea.sflag [#allocation6], 1
    %15 = vsyncpa %s14, 0
    %16 = vsyncpa [#allocation9], 0
    %s17 = scalar_lea.sflag [#allocation9], 1
    %18 = vsyncpa %s17, 0
    %19 = vsyncpa [#allocation4], 0
    %s20 = scalar_lea.sflag [#allocation4], 1
    %21 = vsyncpa %s20, 0
    loop: start=0, step=1, limit=4
    $region2: #{tpu_custom_call.1} parent=1 // loop_pre_header
      _
    $region3: #{tpu_custom_call.1} parent=1 // loop_header
      %s23 = sphi 0, %s27
      %p24 = scmp.ge.s32.totalorder %s23, 4
      %s33 = sphi 0, %s35
      %s36 = sphi 0, %s33
      %s37 = sphi 0, %s36
      %s53 = sphi 0, %s37
      %s59 = sphi 0, %s61
      %s62 = sphi 0, %s59
      %s63 = sphi 0, %s62
      %s79 = sphi 0, %s63
      %s85 = sphi 0, %s87
      %s88 = sphi 0, %s85
      %s89 = sphi 0, %s88
      %s105 = sphi 0, %s89
      %s111 = sphi 0, %s113
      %s114 = sphi 0, %s111
      %s115 = sphi 0, %s114
      %s131 = sphi 0, %s115
      %s137 = sphi 0, %s139
      %s140 = sphi 0, %s137
      %s141 = sphi 0, %s140
      %s157 = sphi 0, %s141
      %s163 = sphi 0, %s165
      %s166 = sphi 0, %s163
      %s167 = sphi 0, %s166
      %s183 = sphi 0, %s167
    $region4: #{tpu_custom_call.1} parent=1 // loop_header_branch
      %26 = sbr.rel (%p24) target = $region8
    $region5: #{tpu_custom_call.1} parent=1 // loop_body
      %s28 = ssub.s32 %s23, 1
      %s29 = ssub.s32 %s23, 2
      %s30 = sadd.s32 %s23, 1
      %s31 = ssub.s32 %s23, %s30
      %p32 = scmp.eq.s32.totalorder %s31, 0
      %s34 = sadd.s32 %s33, 1
      %s35 = scalar_select %p32, %s33, %s34
      %p38 = pneg %p32
      %p39 = scmp.eq.s32.totalorder %s23, 1
      %p40 = por %p38, %p39
      %p41 = scmp.ne.s32.totalorder %s33, %s36
      %p42 = scmp.eq.s32.totalorder %s23, 0
      %p43 = por %p41, %p42
      %p44 = scmp.ne.s32.totalorder %s33, %s36
      %p45 = scmp.eq.s32.totalorder %s28, 1
      %p46 = por %p44, %p45
      %p47 = scmp.ne.s32.totalorder %s36, %s37
      %p48 = scmp.eq.s32.totalorder %s28, 0
      %p49 = por %p47, %p48
      %p50 = scmp.ne.s32.totalorder %s36, %s37
      %p51 = scmp.eq.s32.totalorder %s29, 1
      %p52 = por %p50, %p51
      %p54 = scmp.ne.s32.totalorder %s37, %s53
      %p55 = scmp.eq.s32.totalorder %s29, 0
      %p56 = por %p54, %p55
      %s57 = ssub.s32 %s23, %s30
      %p58 = scmp.eq.s32.totalorder %s57, 0
      %s60 = sadd.s32 %s59, 1
      %s61 = scalar_select %p58, %s59, %s60
      %p64 = pneg %p58
      %p65 = scmp.eq.s32.totalorder %s23, 1
      %p66 = por %p64, %p65
      %p67 = scmp.ne.s32.totalorder %s59, %s62
      %p68 = scmp.eq.s32.totalorder %s23, 0
      %p69 = por %p67, %p68
      %p70 = scmp.ne.s32.totalorder %s59, %s62
      %p71 = scmp.eq.s32.totalorder %s28, 1
      %p72 = por %p70, %p71
      %p73 = scmp.ne.s32.totalorder %s62, %s63
      %p74 = scmp.eq.s32.totalorder %s28, 0
      %p75 = por %p73, %p74
      %p76 = scmp.ne.s32.totalorder %s62, %s63
      %p77 = scmp.eq.s32.totalorder %s29, 1
      %p78 = por %p76, %p77
      %p80 = scmp.ne.s32.totalorder %s63, %s79
      %p81 = scmp.eq.s32.totalorder %s29, 0
      %p82 = por %p80, %p81
      %s83 = ssub.s32 %s23, %s30
      %p84 = scmp.eq.s32.totalorder %s83, 0
      %s86 = sadd.s32 %s85, 1
      %s87 = scalar_select %p84, %s85, %s86
      %p90 = pneg %p84
      %p91 = scmp.eq.s32.totalorder %s23, 1
      %p92 = por %p90, %p91
      %p93 = scmp.ne.s32.totalorder %s85, %s88
      %p94 = scmp.eq.s32.totalorder %s23, 0
      %p95 = por %p93, %p94
      %p96 = scmp.ne.s32.totalorder %s85, %s88
      %p97 = scmp.eq.s32.totalorder %s28, 1
      %p98 = por %p96, %p97
      %p99 = scmp.ne.s32.totalorder %s88, %s89
      %p100 = scmp.eq.s32.totalorder %s28, 0
      %p101 = por %p99, %p100
      %p102 = scmp.ne.s32.totalorder %s88, %s89
      %p103 = scmp.eq.s32.totalorder %s29, 1
      %p104 = por %p102, %p103
      %p106 = scmp.ne.s32.totalorder %s89, %s105
      %p107 = scmp.eq.s32.totalorder %s29, 0
      %p108 = por %p106, %p107
      %s109 = ssub.s32 %s23, %s30
      %p110 = scmp.eq.s32.totalorder %s109, 0
      %s112 = sadd.s32 %s111, 1
      %s113 = scalar_select %p110, %s111, %s112
      %p116 = pneg %p110
      %p117 = scmp.eq.s32.totalorder %s23, 1
      %p118 = por %p116, %p117
      %p119 = scmp.ne.s32.totalorder %s111, %s114
      %p120 = scmp.eq.s32.totalorder %s23, 0
      %p121 = por %p119, %p120
      %p122 = scmp.ne.s32.totalorder %s111, %s114
      %p123 = scmp.eq.s32.totalorder %s28, 1
      %p124 = por %p122, %p123
      %p125 = scmp.ne.s32.totalorder %s114, %s115
      %p126 = scmp.eq.s32.totalorder %s28, 0
      %p127 = por %p125, %p126
      %p128 = scmp.ne.s32.totalorder %s114, %s115
      %p129 = scmp.eq.s32.totalorder %s29, 1
      %p130 = por %p128, %p129
      %p132 = scmp.ne.s32.totalorder %s115, %s131
      %p133 = scmp.eq.s32.totalorder %s29, 0
      %p134 = por %p132, %p133
      %s135 = ssub.s32 %s23, %s30
      %p136 = scmp.eq.s32.totalorder %s135, 0
      %s138 = sadd.s32 %s137, 1
      %s139 = scalar_select %p136, %s137, %s138
      %p142 = pneg %p136
      %p143 = scmp.eq.s32.totalorder %s23, 1
      %p144 = por %p142, %p143
      %p145 = scmp.ne.s32.totalorder %s137, %s140
      %p146 = scmp.eq.s32.totalorder %s23, 0
      %p147 = por %p145, %p146
      %p148 = scmp.ne.s32.totalorder %s137, %s140
      %p149 = scmp.eq.s32.totalorder %s28, 1
      %p150 = por %p148, %p149
      %p151 = scmp.ne.s32.totalorder %s140, %s141
      %p152 = scmp.eq.s32.totalorder %s28, 0
      %p153 = por %p151, %p152
      %p154 = scmp.ne.s32.totalorder %s140, %s141
      %p155 = scmp.eq.s32.totalorder %s29, 1
      %p156 = por %p154, %p155
      %p158 = scmp.ne.s32.totalorder %s141, %s157
      %p159 = scmp.eq.s32.totalorder %s29, 0
      %p160 = por %p158, %p159
      %s161 = ssub.s32 %s23, %s30
      %p162 = scmp.eq.s32.totalorder %s161, 0
      %s164 = sadd.s32 %s163, 1
      %s165 = scalar_select %p162, %s163, %s164
      %p168 = pneg %p162
      %p169 = scmp.eq.s32.totalorder %s23, 1
      %p170 = por %p168, %p169
      %p171 = scmp.ne.s32.totalorder %s163, %s166
      %p172 = scmp.eq.s32.totalorder %s23, 0
      %p173 = por %p171, %p172
      %p174 = scmp.ne.s32.totalorder %s163, %s166
      %p175 = scmp.eq.s32.totalorder %s28, 1
      %p176 = por %p174, %p175
      %p177 = scmp.ne.s32.totalorder %s166, %s167
      %p178 = scmp.eq.s32.totalorder %s28, 0
      %p179 = por %p177, %p178
      %p180 = scmp.ne.s32.totalorder %s166, %s167
      %p181 = scmp.eq.s32.totalorder %s29, 1
      %p182 = por %p180, %p181
      %p184 = scmp.ne.s32.totalorder %s167, %s183
      %p185 = scmp.eq.s32.totalorder %s29, 0
      %p186 = por %p184, %p185
      %p187 = scmp.le.s32.totalorder 1, %s23
      %p188 = scmp.lt.s32.totalorder %s23, 3
      %p189 = pnand %p187, %p188
      %p190 = pneg %p189
      // Predicated region
      $region9: #{tpu_custom_call.1} parent=5 // pred_check
        _
      $region10: #{tpu_custom_call.1} parent=5 // pred_check_branch
        %192 = sbr.rel (%p189) target = $region12
      $region11: #{tpu_custom_call.1} parent=5 // pred_region
        %s193 = ssub.s32 %s23, 1
      $region12: #{tpu_custom_call.1} parent=5 // pred_fallthru
        _
      %p194 = scmp.lt.s32.totalorder %s23, 2
      // Predicated region
      $region13: #{tpu_custom_call.1} parent=5 // pred_check
        %p195 = pneg %p194
      $region14: #{tpu_custom_call.1} parent=5 // pred_check_branch
        %197 = sbr.rel (%p195) target = $region16
      $region15: #{tpu_custom_call.1} parent=5 // pred_region
        // Predicated region
        $region17: #{tpu_custom_call.1} parent=15 // pred_check
          %p198 = pneg %p43
        $region18: #{tpu_custom_call.1} parent=15 // pred_check_branch
          %200 = sbr.rel (%p198) target = $region20
        $region19: #{tpu_custom_call.1} parent=15 // pred_region
          %s201 = sand.u32 %s33, 1
          %s202 = scalar_lea.sflag [#allocation3], %s201
          %s203 = sand.u32 %s33, 1
          %s204 = smul.addr %s203, 64
          %s205 = scalar_lea.vmem [#allocation2], %s204
          %s207 = ssub.s32 1024, 1024
          %208 = vsyncadd %s202, %s207
          %s209 = smul.addr %s23, 8
          %s210 = smul.addr %s209, 128
          %s211 = scalar_lea.hbm %s0, %s210
          %s212 = sshll.u32 %s205, 4
          %s213 = int_to_ptr.vmem [resolvable:$true] %s212
          %218 = dma.hbm_to_vmem [thread:$0]  %s211, 1024, %s213, %s202, 128, 128, 8
        $region20: #{tpu_custom_call.1} parent=15 // pred_fallthru
          _
        // Predicated region
        $region21: #{tpu_custom_call.1} parent=15 // pred_check
          %p219 = pneg %p69
        $region22: #{tpu_custom_call.1} parent=15 // pred_check_branch
          %221 = sbr.rel (%p219) target = $region24
        $region23: #{tpu_custom_call.1} parent=15 // pred_region
          %s222 = sand.u32 %s23, 1
          %s223 = scalar_lea.sflag [#allocation6], %s222
          %s224 = sand.u32 %s59, 1
          %s225 = smul.addr %s224, 512
          %s226 = scalar_lea.vmem [#allocation5], %s225
          %s228 = ssub.s32 8192, 8192
          %229 = vsyncadd %s223, %s228
          %s230 = smul.addr %s23, 64
          %s231 = smul.addr %s230, 128
          %s232 = scalar_lea.hbm %s1, %s231
          %s233 = sshll.u32 %s226, 4
          %s234 = int_to_ptr.vmem [resolvable:$true] %s233
          %239 = dma.hbm_to_vmem [thread:$0]  %s232, 8192, %s234, %s223, 128, 128, 8
        $region24: #{tpu_custom_call.1} parent=15 // pred_fallthru
          _
        // Predicated region
        $region25: #{tpu_custom_call.1} parent=15 // pred_check
          %p240 = pneg %p95
        $region26: #{tpu_custom_call.1} parent=15 // pred_check_branch
          %242 = sbr.rel (%p240) target = $region28
        $region27: #{tpu_custom_call.1} parent=15 // pred_region
          %s243 = sand.u32 %s23, 1
          %s244 = scalar_lea.sflag [#allocation6], %s243
          %s245 = sand.u32 %s85, 1
          %s246 = smul.addr %s245, 512
          %s247 = scalar_lea.vmem [#allocation7], %s246
          %s249 = ssub.s32 8192, 8192
          %250 = vsyncadd %s244, %s249
          %s251 = smul.addr %s23, 64
          %s252 = smul.addr %s251, 128
          %s253 = scalar_lea.hbm %s2, %s252
          %s254 = sshll.u32 %s247, 4
          %s255 = int_to_ptr.vmem [resolvable:$true] %s254
          %260 = dma.hbm_to_vmem [thread:$0]  %s253, 8192, %s255, %s244, 128, 128, 8
        $region28: #{tpu_custom_call.1} parent=15 // pred_fallthru
          _
        // Predicated region
        $region29: #{tpu_custom_call.1} parent=15 // pred_check
          %p261 = pneg %p121
        $region30: #{tpu_custom_call.1} parent=15 // pred_check_branch
          %263 = sbr.rel (%p261) target = $region32
        $region31: #{tpu_custom_call.1} parent=15 // pred_region
          %s264 = sand.u32 %s23, 1
          %s265 = scalar_lea.sflag [#allocation9], %s264
          %s266 = sand.u32 %s111, 1
          %s267 = smul.addr %s266, 8
          %s268 = scalar_lea.vmem [#allocation8], %s267
          %s270 = ssub.s32 128, 128
          %271 = vsyncadd %s265, %s270
          %s272 = smul.addr %s23, 128
          %s273 = scalar_lea.hbm %s3, %s272
          %s275 = sshll.u32 %s268, 4
          %s276 = int_to_ptr.vmem [resolvable:$true] %s275
          %278 = dma.hbm_to_vmem [thread:$0]  %s273, 128, %s276, %s265
        $region32: #{tpu_custom_call.1} parent=15 // pred_fallthru
          _
        // Predicated region
        $region33: #{tpu_custom_call.1} parent=15 // pred_check
          %p279 = pneg %p147
        $region34: #{tpu_custom_call.1} parent=15 // pred_check_branch
          %281 = sbr.rel (%p279) target = $region36
        $region35: #{tpu_custom_call.1} parent=15 // pred_region
          %s282 = sand.u32 %s23, 1
          %s283 = scalar_lea.sflag [#allocation9], %s282
          %s284 = sand.u32 %s137, 1
          %s285 = smul.addr %s284, 64
          %s286 = scalar_lea.vmem [#allocation10], %s285
          %s288 = ssub.s32 1024, 1024
          %289 = vsyncadd %s283, %s288
          %s290 = smul.addr %s23, 8
          %s291 = smul.addr %s290, 128
          %s292 = scalar_lea.hbm %s4, %s291
          %s293 = sshll.u32 %s286, 4
          %s294 = int_to_ptr.vmem [resolvable:$true] %s293
          %299 = dma.hbm_to_vmem [thread:$0]  %s292, 1024, %s294, %s283, 128, 128, 8
        $region36: #{tpu_custom_call.1} parent=15 // pred_fallthru
          _
      $region16: #{tpu_custom_call.1} parent=5 // pred_fallthru
        _
      %p300 = scmp.le.s32.totalorder 1, %s23
      %p301 = scmp.lt.s32.totalorder %s23, 3
      %p302 = pnand %p300, %p301
      %p303 = pneg %p302
      // Predicated region
      $region37: #{tpu_custom_call.1} parent=5 // pred_check
        _
      $region38: #{tpu_custom_call.1} parent=5 // pred_check_branch
        %305 = sbr.rel (%p302) target = $region40
      $region39: #{tpu_custom_call.1} parent=5 // pred_region
        %s306 = ssub.s32 %s23, 1
        %s307 = sand.u32 %s36, 1
        %s308 = scalar_lea.sflag [#allocation3], %s307
        %s309 = sand.u32 %s36, 1
        %s310 = smul.addr %s309, 64
        %s311 = scalar_lea.vmem [#allocation2], %s310
        // Predicated region
        $region41: #{tpu_custom_call.1} parent=39 // pred_check
          %p312 = pneg %p49
        $region42: #{tpu_custom_call.1} parent=39 // pred_check_branch
          %314 = sbr.rel (%p312) target = $region44
        $region43: #{tpu_custom_call.1} parent=39 // pred_region
          %315 = dma.done %s308, 1024
        $region44: #{tpu_custom_call.1} parent=39 // pred_fallthru
          _
        %s316 = sand.u32 %s28, 1
        %s317 = scalar_lea.sflag [#allocation6], %s316
        %s318 = sand.u32 %s62, 1
        %s319 = smul.addr %s318, 512
        %s320 = scalar_lea.vmem [#allocation5], %s319
        // Predicated region
        $region45: #{tpu_custom_call.1} parent=39 // pred_check
          %p321 = pneg %p75
        $region46: #{tpu_custom_call.1} parent=39 // pred_check_branch
          %323 = sbr.rel (%p321) target = $region48
        $region47: #{tpu_custom_call.1} parent=39 // pred_region
          %324 = dma.done %s317, 8192
        $region48: #{tpu_custom_call.1} parent=39 // pred_fallthru
          _
        %s325 = sand.u32 %s28, 1
        %s326 = scalar_lea.sflag [#allocation6], %s325
        %s327 = sand.u32 %s88, 1
        %s328 = smul.addr %s327, 512
        %s329 = scalar_lea.vmem [#allocation7], %s328
        // Predicated region
        $region49: #{tpu_custom_call.1} parent=39 // pred_check
          %p330 = pneg %p101
        $region50: #{tpu_custom_call.1} parent=39 // pred_check_branch
          %332 = sbr.rel (%p330) target = $region52
        $region51: #{tpu_custom_call.1} parent=39 // pred_region
          %333 = dma.done %s326, 8192
        $region52: #{tpu_custom_call.1} parent=39 // pred_fallthru
          _
        %s334 = sand.u32 %s28, 1
        %s335 = scalar_lea.sflag [#allocation9], %s334
        %s336 = sand.u32 %s114, 1
        %s337 = smul.addr %s336, 8
        %s338 = scalar_lea.vmem [#allocation8], %s337
        // Predicated region
        $region53: #{tpu_custom_call.1} parent=39 // pred_check
          %p339 = pneg %p127
        $region54: #{tpu_custom_call.1} parent=39 // pred_check_branch
          %341 = sbr.rel (%p339) target = $region56
        $region55: #{tpu_custom_call.1} parent=39 // pred_region
          %342 = dma.done %s335, 128
        $region56: #{tpu_custom_call.1} parent=39 // pred_fallthru
          _
        %s343 = sand.u32 %s28, 1
        %s344 = scalar_lea.sflag [#allocation9], %s343
        %s345 = sand.u32 %s140, 1
        %s346 = smul.addr %s345, 64
        %s347 = scalar_lea.vmem [#allocation10], %s346
        // Predicated region
        $region57: #{tpu_custom_call.1} parent=39 // pred_check
          %p348 = pneg %p153
        $region58: #{tpu_custom_call.1} parent=39 // pred_check_branch
          %350 = sbr.rel (%p348) target = $region60
        $region59: #{tpu_custom_call.1} parent=39 // pred_region
          %351 = dma.done %s344, 1024
        $region60: #{tpu_custom_call.1} parent=39 // pred_fallthru
          _
        %s352 = sand.u32 %s36, 1
        %s353 = scalar_lea.sflag [#allocation3], %s352
        %s354 = sand.u32 %s36, 1
        %s355 = smul.addr %s354, 64
        %s356 = scalar_lea.vmem [#allocation2], %s355
        %p357 = pneg %p49
        %p358 = pneg %p46
        %s359 = sand.u32 %s28, 1
        %s360 = scalar_lea.sflag [#allocation6], %s359
        %s361 = sand.u32 %s62, 1
        %s362 = smul.addr %s361, 512
        %s363 = scalar_lea.vmem [#allocation5], %s362
        %p364 = pneg %p75
        %p365 = pneg %p72
        %s366 = sand.u32 %s28, 1
        %s367 = scalar_lea.sflag [#allocation6], %s366
        %s368 = sand.u32 %s88, 1
        %s369 = smul.addr %s368, 512
        %s370 = scalar_lea.vmem [#allocation7], %s369
        %p371 = pneg %p101
        %p372 = pneg %p98
        %s373 = sand.u32 %s28, 1
        %s374 = scalar_lea.sflag [#allocation9], %s373
        %s375 = sand.u32 %s114, 1
        %s376 = smul.addr %s375, 8
        %s377 = scalar_lea.vmem [#allocation8], %s376
        %p378 = pneg %p127
        %p379 = pneg %p124
        %s380 = sand.u32 %s28, 1
        %s381 = scalar_lea.sflag [#allocation9], %s380
        %s382 = sand.u32 %s140, 1
        %s383 = smul.addr %s382, 64
        %s384 = scalar_lea.vmem [#allocation10], %s383
        %p385 = pneg %p153
        %p386 = pneg %p150
        %p387 = pneg %p179
        %p388 = pneg %p176
        %s389 = sand.u32 %s166, 1
        %s390 = scalar_lea.sflag [#allocation4], %s389
        %s391 = sand.u32 %s166, 1
        %s392 = smul.addr %s391, 64
        %s393 = scalar_lea.vmem [#allocation11], %s392
        %v394 = vld [vmem:[%s311] sm:$0xff]
        %v395 = vld [vmem:[%s311 + $0x8] sm:$0xff]
        %v396 = vld [vmem:[%s311 + $0x10] sm:$0xff]
        %v397 = vld [vmem:[%s311 + $0x18] sm:$0xff]
        %v398 = vld [vmem:[%s311 + $0x20] sm:$0xff]
        %v399 = vld [vmem:[%s311 + $0x28] sm:$0xff]
        %v400 = vld [vmem:[%s311 + $0x30] sm:$0xff]
        %v401 = vld [vmem:[%s311 + $0x38] sm:$0xff]
        %v402 = vld [vmem:[%s320] sm:$0xff]
        %v403 = vld [vmem:[%s320 + $0x8] sm:$0xff]
        %v404 = vld [vmem:[%s320 + $0x10] sm:$0xff]
        %v405 = vld [vmem:[%s320 + $0x18] sm:$0xff]
        %v406 = vld [vmem:[%s320 + $0x20] sm:$0xff]
        %v407 = vld [vmem:[%s320 + $0x28] sm:$0xff]
        %v408 = vld [vmem:[%s320 + $0x30] sm:$0xff]
        %v409 = vld [vmem:[%s320 + $0x38] sm:$0xff]
        %v410 = vld [vmem:[%s320 + $0x40] sm:$0xff]
        %v411 = vld [vmem:[%s320 + $0x48] sm:$0xff]
        %v412 = vld [vmem:[%s320 + $0x50] sm:$0xff]
        %v413 = vld [vmem:[%s320 + $0x58] sm:$0xff]
        %v414 = vld [vmem:[%s320 + $0x60] sm:$0xff]
        %v415 = vld [vmem:[%s320 + $0x68] sm:$0xff]
        %v416 = vld [vmem:[%s320 + $0x70] sm:$0xff]
        %v417 = vld [vmem:[%s320 + $0x78] sm:$0xff]
        %v418 = vld [vmem:[%s320 + $0x80] sm:$0xff]
        %v419 = vld [vmem:[%s320 + $0x88] sm:$0xff]
        %v420 = vld [vmem:[%s320 + $0x90] sm:$0xff]
        %v421 = vld [vmem:[%s320 + $0x98] sm:$0xff]
        %v422 = vld [vmem:[%s320 + $0xa0] sm:$0xff]
        %v423 = vld [vmem:[%s320 + $0xa8] sm:$0xff]
        %v424 = vld [vmem:[%s320 + $0xb0] sm:$0xff]
        %v425 = vld [vmem:[%s320 + $0xb8] sm:$0xff]
        %v426 = vld [vmem:[%s320 + $0xc0] sm:$0xff]
        %v427 = vld [vmem:[%s320 + $0xc8] sm:$0xff]
        %v428 = vld [vmem:[%s320 + $0xd0] sm:$0xff]
        %v429 = vld [vmem:[%s320 + $0xd8] sm:$0xff]
        %v430 = vld [vmem:[%s320 + $0xe0] sm:$0xff]
        %v431 = vld [vmem:[%s320 + $0xe8] sm:$0xff]
        %v432 = vld [vmem:[%s320 + $0xf0] sm:$0xff]
        %v433 = vld [vmem:[%s320 + $0xf8] sm:$0xff]
        %v434 = vld [vmem:[%s320 + $0x100] sm:$0xff]
        %v435 = vld [vmem:[%s320 + $0x108] sm:$0xff]
        %v436 = vld [vmem:[%s320 + $0x110] sm:$0xff]
        %v437 = vld [vmem:[%s320 + $0x118] sm:$0xff]
        %v438 = vld [vmem:[%s320 + $0x120] sm:$0xff]
        %v439 = vld [vmem:[%s320 + $0x128] sm:$0xff]
        %v440 = vld [vmem:[%s320 + $0x130] sm:$0xff]
        %v441 = vld [vmem:[%s320 + $0x138] sm:$0xff]
        %v442 = vld [vmem:[%s320 + $0x140] sm:$0xff]
        %v443 = vld [vmem:[%s320 + $0x148] sm:$0xff]
        %v444 = vld [vmem:[%s320 + $0x150] sm:$0xff]
        %v445 = vld [vmem:[%s320 + $0x158] sm:$0xff]
        %v446 = vld [vmem:[%s320 + $0x160] sm:$0xff]
        %v447 = vld [vmem:[%s320 + $0x168] sm:$0xff]
        %v448 = vld [vmem:[%s320 + $0x170] sm:$0xff]
        %v449 = vld [vmem:[%s320 + $0x178] sm:$0xff]
        %v450 = vld [vmem:[%s320 + $0x180] sm:$0xff]
        %v451 = vld [vmem:[%s320 + $0x188] sm:$0xff]
        %v452 = vld [vmem:[%s320 + $0x190] sm:$0xff]
        %v453 = vld [vmem:[%s320 + $0x198] sm:$0xff]
        %v454 = vld [vmem:[%s320 + $0x1a0] sm:$0xff]
        %v455 = vld [vmem:[%s320 + $0x1a8] sm:$0xff]
        %v456 = vld [vmem:[%s320 + $0x1b0] sm:$0xff]
        %v457 = vld [vmem:[%s320 + $0x1b8] sm:$0xff]
        %v458 = vld [vmem:[%s320 + $0x1c0] sm:$0xff]
        %v459 = vld [vmem:[%s320 + $0x1c8] sm:$0xff]
        %v460 = vld [vmem:[%s320 + $0x1d0] sm:$0xff]
        %v461 = vld [vmem:[%s320 + $0x1d8] sm:$0xff]
        %v462 = vld [vmem:[%s320 + $0x1e0] sm:$0xff]
        %v463 = vld [vmem:[%s320 + $0x1e8] sm:$0xff]
        %v464 = vld [vmem:[%s320 + $0x1f0] sm:$0xff]
        %v465 = vld [vmem:[%s320 + $0x1f8] sm:$0xff]
        %v466 = vld [vmem:[%s329] sm:$0xff]
        %v467 = vld [vmem:[%s329 + $0x8] sm:$0xff]
        %v468 = vld [vmem:[%s329 + $0x10] sm:$0xff]
        %v469 = vld [vmem:[%s329 + $0x18] sm:$0xff]
        %v470 = vld [vmem:[%s329 + $0x20] sm:$0xff]
        %v471 = vld [vmem:[%s329 + $0x28] sm:$0xff]
        %v472 = vld [vmem:[%s329 + $0x30] sm:$0xff]
        %v473 = vld [vmem:[%s329 + $0x38] sm:$0xff]
        %v474 = vld [vmem:[%s329 + $0x40] sm:$0xff]
        %v475 = vld [vmem:[%s329 + $0x48] sm:$0xff]
        %v476 = vld [vmem:[%s329 + $0x50] sm:$0xff]
        %v477 = vld [vmem:[%s329 + $0x58] sm:$0xff]
        %v478 = vld [vmem:[%s329 + $0x60] sm:$0xff]
        %v479 = vld [vmem:[%s329 + $0x68] sm:$0xff]
        %v480 = vld [vmem:[%s329 + $0x70] sm:$0xff]
        %v481 = vld [vmem:[%s329 + $0x78] sm:$0xff]
        %v482 = vld [vmem:[%s329 + $0x80] sm:$0xff]
        %v483 = vld [vmem:[%s329 + $0x88] sm:$0xff]
        %v484 = vld [vmem:[%s329 + $0x90] sm:$0xff]
        %v485 = vld [vmem:[%s329 + $0x98] sm:$0xff]
        %v486 = vld [vmem:[%s329 + $0xa0] sm:$0xff]
        %v487 = vld [vmem:[%s329 + $0xa8] sm:$0xff]
        %v488 = vld [vmem:[%s329 + $0xb0] sm:$0xff]
        %v489 = vld [vmem:[%s329 + $0xb8] sm:$0xff]
        %v490 = vld [vmem:[%s329 + $0xc0] sm:$0xff]
        %v491 = vld [vmem:[%s329 + $0xc8] sm:$0xff]
        %v492 = vld [vmem:[%s329 + $0xd0] sm:$0xff]
        %v493 = vld [vmem:[%s329 + $0xd8] sm:$0xff]
        %v494 = vld [vmem:[%s329 + $0xe0] sm:$0xff]
        %v495 = vld [vmem:[%s329 + $0xe8] sm:$0xff]
        %v496 = vld [vmem:[%s329 + $0xf0] sm:$0xff]
        %v497 = vld [vmem:[%s329 + $0xf8] sm:$0xff]
        %v498 = vld [vmem:[%s329 + $0x100] sm:$0xff]
        %v499 = vld [vmem:[%s329 + $0x108] sm:$0xff]
        %v500 = vld [vmem:[%s329 + $0x110] sm:$0xff]
        %v501 = vld [vmem:[%s329 + $0x118] sm:$0xff]
        %v502 = vld [vmem:[%s329 + $0x120] sm:$0xff]
        %v503 = vld [vmem:[%s329 + $0x128] sm:$0xff]
        %v504 = vld [vmem:[%s329 + $0x130] sm:$0xff]
        %v505 = vld [vmem:[%s329 + $0x138] sm:$0xff]
        %v506 = vld [vmem:[%s329 + $0x140] sm:$0xff]
        %v507 = vld [vmem:[%s329 + $0x148] sm:$0xff]
        %v508 = vld [vmem:[%s329 + $0x150] sm:$0xff]
        %v509 = vld [vmem:[%s329 + $0x158] sm:$0xff]
        %v510 = vld [vmem:[%s329 + $0x160] sm:$0xff]
        %v511 = vld [vmem:[%s329 + $0x168] sm:$0xff]
        %v512 = vld [vmem:[%s329 + $0x170] sm:$0xff]
        %v513 = vld [vmem:[%s329 + $0x178] sm:$0xff]
        %v514 = vld [vmem:[%s329 + $0x180] sm:$0xff]
        %v515 = vld [vmem:[%s329 + $0x188] sm:$0xff]
        %v516 = vld [vmem:[%s329 + $0x190] sm:$0xff]
        %v517 = vld [vmem:[%s329 + $0x198] sm:$0xff]
        %v518 = vld [vmem:[%s329 + $0x1a0] sm:$0xff]
        %v519 = vld [vmem:[%s329 + $0x1a8] sm:$0xff]
        %v520 = vld [vmem:[%s329 + $0x1b0] sm:$0xff]
        %v521 = vld [vmem:[%s329 + $0x1b8] sm:$0xff]
        %v522 = vld [vmem:[%s329 + $0x1c0] sm:$0xff]
        %v523 = vld [vmem:[%s329 + $0x1c8] sm:$0xff]
        %v524 = vld [vmem:[%s329 + $0x1d0] sm:$0xff]
        %v525 = vld [vmem:[%s329 + $0x1d8] sm:$0xff]
        %v526 = vld [vmem:[%s329 + $0x1e0] sm:$0xff]
        %v527 = vld [vmem:[%s329 + $0x1e8] sm:$0xff]
        %v528 = vld [vmem:[%s329 + $0x1f0] sm:$0xff]
        %v529 = vld [vmem:[%s329 + $0x1f8] sm:$0xff]
        %v530 = vld [vmem:[%s338] sm:$0xff]
        %v531 = vld [vmem:[%s347] sm:$0xff]
        %v532 = vld [vmem:[%s347 + $0x8] sm:$0xff]
        %v533 = vld [vmem:[%s347 + $0x10] sm:$0xff]
        %v534 = vld [vmem:[%s347 + $0x18] sm:$0xff]
        %v535 = vld [vmem:[%s347 + $0x20] sm:$0xff]
        %v536 = vld [vmem:[%s347 + $0x28] sm:$0xff]
        %v537 = vld [vmem:[%s347 + $0x30] sm:$0xff]
        %v538 = vld [vmem:[%s347 + $0x38] sm:$0xff]
        %vm539 = vcmask 523264
        %v541 = vsel %vm539, %v394, 0
        %v544 = vsel %vm539, %v402, 0
        %v547 = vsel %vm539, %v403, 0
        %v550 = vsel %vm539, %v404, 0
        %v553 = vsel %vm539, %v405, 0
        %v556 = vsel %vm539, %v406, 0
        %v559 = vsel %vm539, %v407, 0
        %v562 = vsel %vm539, %v408, 0
        %v565 = vsel %vm539, %v409, 0
        %567 = vmatprep.subr.mxu0 0.0
        %568 = vmatpush1.xpose.msra.mxu0 %v544
        %569 = vmatprep.subr.mxu0 0.0
        %570 = vmatpush1.xpose.msra.mxu0 %v547
        %571 = vmatprep.subr.mxu0 0.0
        %572 = vmatpush1.xpose.msra.mxu0 %v550
        %573 = vmatprep.subr.mxu0 0.0
        %574 = vmatpush1.xpose.msra.mxu0 %v553
        %575 = vmatprep.subr.mxu0 0.0
        %576 = vmatpush1.xpose.msra.mxu0 %v556
        %577 = vmatprep.subr.mxu0 0.0
        %578 = vmatpush1.xpose.msra.mxu0 %v559
        %579 = vmatprep.subr.mxu0 0.0
        %580 = vmatpush1.xpose.msra.mxu0 %v562
        %581 = vmatprep.subr.mxu0 0.0
        %582 = vmatpush1.xpose.msra.mxu0 %v565
        %583 = vmatprep.subr.mxu0 0.0
        %584 = vmatpush1.xpose.msra.mxu0 0.0
        %585 = vmatprep.subr.mxu0 0.0
        %586 = vmatpush1.xpose.msra.mxu0 0.0
        %587 = vmatprep.subr.mxu0 0.0
        %588 = vmatpush1.xpose.msra.mxu0 0.0
        %589 = vmatprep.subr.mxu0 0.0
        %590 = vmatpush1.xpose.msra.mxu0 0.0
        %591 = vmatprep.subr.mxu0 0.0
        %592 = vmatpush1.xpose.msra.mxu0 0.0
        %593 = vmatprep.subr.mxu0 0.0
        %594 = vmatpush1.xpose.msra.mxu0 0.0
        %595 = vmatprep.subr.mxu0 0.0
        %596 = vmatpush1.xpose.msra.mxu0 0.0
        %597 = vmatprep.subr.mxu0 0.0
        %598 = vmatpush1.xpose.msra.mxu0 0.0
        %599 = vmatprep.subr.mxu0 0.0
        %600 = vmatpush1.xpose.msra.mxu0 0.0
        %601 = vmatprep.subr.mxu0 0.0
        %602 = vmatpush1.xpose.msra.mxu0 0.0
        %603 = vmatprep.subr.mxu0 0.0
        %604 = vmatpush1.xpose.msra.mxu0 0.0
        %605 = vmatprep.subr.mxu0 0.0
        %606 = vmatpush1.xpose.msra.mxu0 0.0
        %607 = vmatprep.subr.mxu0 0.0
        %608 = vmatpush1.xpose.msra.mxu0 0.0
        %609 = vmatprep.subr.mxu0 0.0
        %610 = vmatpush1.xpose.msra.mxu0 0.0
        %611 = vmatprep.subr.mxu0 0.0
        %612 = vmatpush1.xpose.msra.mxu0 0.0
        %613 = vmatprep.subr.mxu0 0.0
        %614 = vmatpush1.xpose.msra.mxu0 0.0
        %615 = vmatprep.subr.mxu0 0.0
        %616 = vmatpush1.xpose.msra.mxu0 0.0
        %617 = vmatprep.subr.mxu0 0.0
        %618 = vmatpush1.xpose.msra.mxu0 0.0
        %619 = vmatprep.subr.mxu0 0.0
        %620 = vmatpush1.xpose.msra.mxu0 0.0
        %621 = vmatprep.subr.mxu0 0.0
        %622 = vmatpush1.xpose.msra.mxu0 0.0
        %623 = vmatprep.subr.mxu0 0.0
        %624 = vmatpush1.xpose.msra.mxu0 0.0
        %625 = vmatprep.subr.mxu0 0.0
        %626 = vmatpush1.xpose.msra.mxu0 0.0
        %627 = vmatprep.subr.mxu0 0.0
        %628 = vmatpush1.xpose.msra.mxu0 0.0
        %629 = vmatprep.subr.mxu0 0.0
        %630 = vmatpush1.xpose.msra.mxu0 0.0
        %631 = vmatprep.mubr.f32.mxu0 0.0
        %632 = vmatmul.mubr.f32.gmra.mrb[0].mxu0 %v541
        %v633 = vpop.f32.mrb[0].mxu0
        %v634 = vadd.f32 0.0, %v633
        %v635 = vpop.f32.mrb[0].mxu0
        %636 = vdwg.mxu0
        %v638 = vsel %vm539, %v395, 0
        %v641 = vsel %vm539, %v410, 0
        %v644 = vsel %vm539, %v411, 0
        %v647 = vsel %vm539, %v412, 0
        %v650 = vsel %vm539, %v413, 0
        %v653 = vsel %vm539, %v414, 0
        %v656 = vsel %vm539, %v415, 0
        %v659 = vsel %vm539, %v416, 0
        %v662 = vsel %vm539, %v417, 0
        %664 = vmatprep.subr.mxu0 0.0
        %665 = vmatpush1.xpose.msra.mxu0 %v641
        %666 = vmatprep.subr.mxu0 0.0
        %667 = vmatpush1.xpose.msra.mxu0 %v644
        %668 = vmatprep.subr.mxu0 0.0
        %669 = vmatpush1.xpose.msra.mxu0 %v647
        %670 = vmatprep.subr.mxu0 0.0
        %671 = vmatpush1.xpose.msra.mxu0 %v650
        %672 = vmatprep.subr.mxu0 0.0
        %673 = vmatpush1.xpose.msra.mxu0 %v653
        %674 = vmatprep.subr.mxu0 0.0
        %675 = vmatpush1.xpose.msra.mxu0 %v656
        %676 = vmatprep.subr.mxu0 0.0
        %677 = vmatpush1.xpose.msra.mxu0 %v659
        %678 = vmatprep.subr.mxu0 0.0
        %679 = vmatpush1.xpose.msra.mxu0 %v662
        %680 = vmatprep.subr.mxu0 0.0
        %681 = vmatpush1.xpose.msra.mxu0 0.0
        %682 = vmatprep.subr.mxu0 0.0
        %683 = vmatpush1.xpose.msra.mxu0 0.0
        %684 = vmatprep.subr.mxu0 0.0
        %685 = vmatpush1.xpose.msra.mxu0 0.0
        %686 = vmatprep.subr.mxu0 0.0
        %687 = vmatpush1.xpose.msra.mxu0 0.0
        %688 = vmatprep.subr.mxu0 0.0
        %689 = vmatpush1.xpose.msra.mxu0 0.0
        %690 = vmatprep.subr.mxu0 0.0
        %691 = vmatpush1.xpose.msra.mxu0 0.0
        %692 = vmatprep.subr.mxu0 0.0
        %693 = vmatpush1.xpose.msra.mxu0 0.0
        %694 = vmatprep.subr.mxu0 0.0
        %695 = vmatpush1.xpose.msra.mxu0 0.0
        %696 = vmatprep.subr.mxu0 0.0
        %697 = vmatpush1.xpose.msra.mxu0 0.0
        %698 = vmatprep.subr.mxu0 0.0
        %699 = vmatpush1.xpose.msra.mxu0 0.0
        %700 = vmatprep.subr.mxu0 0.0
        %701 = vmatpush1.xpose.msra.mxu0 0.0
        %702 = vmatprep.subr.mxu0 0.0
        %703 = vmatpush1.xpose.msra.mxu0 0.0
        %704 = vmatprep.subr.mxu0 0.0
        %705 = vmatpush1.xpose.msra.mxu0 0.0
        %706 = vmatprep.subr.mxu0 0.0
        %707 = vmatpush1.xpose.msra.mxu0 0.0
        %708 = vmatprep.subr.mxu0 0.0
        %709 = vmatpush1.xpose.msra.mxu0 0.0
        %710 = vmatprep.subr.mxu0 0.0
        %711 = vmatpush1.xpose.msra.mxu0 0.0
        %712 = vmatprep.subr.mxu0 0.0
        %713 = vmatpush1.xpose.msra.mxu0 0.0
        %714 = vmatprep.subr.mxu0 0.0
        %715 = vmatpush1.xpose.msra.mxu0 0.0
        %716 = vmatprep.subr.mxu0 0.0
        %717 = vmatpush1.xpose.msra.mxu0 0.0
        %718 = vmatprep.subr.mxu0 0.0
        %719 = vmatpush1.xpose.msra.mxu0 0.0
        %720 = vmatprep.subr.mxu0 0.0
        %721 = vmatpush1.xpose.msra.mxu0 0.0
        %722 = vmatprep.subr.mxu0 0.0
        %723 = vmatpush1.xpose.msra.mxu0 0.0
        %724 = vmatprep.subr.mxu0 0.0
        %725 = vmatpush1.xpose.msra.mxu0 0.0
        %726 = vmatprep.subr.mxu0 0.0
        %727 = vmatpush1.xpose.msra.mxu0 0.0
        %728 = vmatprep.mubr.f32.mxu0 0.0
        %729 = vmatmul.mubr.f32.gmra.mrb[0].mxu0 %v638
        %v730 = vpop.f32.mrb[0].mxu0
        %v731 = vadd.f32 0.0, %v730
        %v732 = vpop.f32.mrb[0].mxu0
        %733 = vdwg.mxu0
        %v735 = vsel %vm539, %v396, 0
        %v738 = vsel %vm539, %v418, 0
        %v741 = vsel %vm539, %v419, 0
        %v744 = vsel %vm539, %v420, 0
        %v747 = vsel %vm539, %v421, 0
        %v750 = vsel %vm539, %v422, 0
        %v753 = vsel %vm539, %v423, 0
        %v756 = vsel %vm539, %v424, 0
        %v759 = vsel %vm539, %v425, 0
        %761 = vmatprep.subr.mxu0 0.0
        %762 = vmatpush1.xpose.msra.mxu0 %v738
        %763 = vmatprep.subr.mxu0 0.0
        %764 = vmatpush1.xpose.msra.mxu0 %v741
        %765 = vmatprep.subr.mxu0 0.0
        %766 = vmatpush1.xpose.msra.mxu0 %v744
        %767 = vmatprep.subr.mxu0 0.0
        %768 = vmatpush1.xpose.msra.mxu0 %v747
        %769 = vmatprep.subr.mxu0 0.0
        %770 = vmatpush1.xpose.msra.mxu0 %v750
        %771 = vmatprep.subr.mxu0 0.0
        %772 = vmatpush1.xpose.msra.mxu0 %v753
        %773 = vmatprep.subr.mxu0 0.0
        %774 = vmatpush1.xpose.msra.mxu0 %v756
        %775 = vmatprep.subr.mxu0 0.0
        %776 = vmatpush1.xpose.msra.mxu0 %v759
        %777 = vmatprep.subr.mxu0 0.0
        %778 = vmatpush1.xpose.msra.mxu0 0.0
        %779 = vmatprep.subr.mxu0 0.0
        %780 = vmatpush1.xpose.msra.mxu0 0.0
        %781 = vmatprep.subr.mxu0 0.0
        %782 = vmatpush1.xpose.msra.mxu0 0.0
        %783 = vmatprep.subr.mxu0 0.0
        %784 = vmatpush1.xpose.msra.mxu0 0.0
        %785 = vmatprep.subr.mxu0 0.0
        %786 = vmatpush1.xpose.msra.mxu0 0.0
        %787 = vmatprep.subr.mxu0 0.0
        %788 = vmatpush1.xpose.msra.mxu0 0.0
        %789 = vmatprep.subr.mxu0 0.0
        %790 = vmatpush1.xpose.msra.mxu0 0.0
        %791 = vmatprep.subr.mxu0 0.0
        %792 = vmatpush1.xpose.msra.mxu0 0.0
        %793 = vmatprep.subr.mxu0 0.0
        %794 = vmatpush1.xpose.msra.mxu0 0.0
        %795 = vmatprep.subr.mxu0 0.0
        %796 = vmatpush1.xpose.msra.mxu0 0.0
        %797 = vmatprep.subr.mxu0 0.0
        %798 = vmatpush1.xpose.msra.mxu0 0.0
        %799 = vmatprep.subr.mxu0 0.0
        %800 = vmatpush1.xpose.msra.mxu0 0.0
        %801 = vmatprep.subr.mxu0 0.0
        %802 = vmatpush1.xpose.msra.mxu0 0.0
        %803 = vmatprep.subr.mxu0 0.0
        %804 = vmatpush1.xpose.msra.mxu0 0.0
        %805 = vmatprep.subr.mxu0 0.0
        %806 = vmatpush1.xpose.msra.mxu0 0.0
        %807 = vmatprep.subr.mxu0 0.0
        %808 = vmatpush1.xpose.msra.mxu0 0.0
        %809 = vmatprep.subr.mxu0 0.0
        %810 = vmatpush1.xpose.msra.mxu0 0.0
        %811 = vmatprep.subr.mxu0 0.0
        %812 = vmatpush1.xpose.msra.mxu0 0.0
        %813 = vmatprep.subr.mxu0 0.0
        %814 = vmatpush1.xpose.msra.mxu0 0.0
        %815 = vmatprep.subr.mxu0 0.0
        %816 = vmatpush1.xpose.msra.mxu0 0.0
        %817 = vmatprep.subr.mxu0 0.0
        %818 = vmatpush1.xpose.msra.mxu0 0.0
        %819 = vmatprep.subr.mxu0 0.0
        %820 = vmatpush1.xpose.msra.mxu0 0.0
        %821 = vmatprep.subr.mxu0 0.0
        %822 = vmatpush1.xpose.msra.mxu0 0.0
        %823 = vmatprep.subr.mxu0 0.0
        %824 = vmatpush1.xpose.msra.mxu0 0.0
        %825 = vmatprep.mubr.f32.mxu0 0.0
        %826 = vmatmul.mubr.f32.gmra.mrb[0].mxu0 %v735
        %v827 = vpop.f32.mrb[0].mxu0
        %v828 = vadd.f32 0.0, %v827
        %v829 = vpop.f32.mrb[0].mxu0
        %830 = vdwg.mxu0
        %v832 = vsel %vm539, %v397, 0
        %v835 = vsel %vm539, %v426, 0
        %v838 = vsel %vm539, %v427, 0
        %v841 = vsel %vm539, %v428, 0
        %v844 = vsel %vm539, %v429, 0
        %v847 = vsel %vm539, %v430, 0
        %v850 = vsel %vm539, %v431, 0
        %v853 = vsel %vm539, %v432, 0
        %v856 = vsel %vm539, %v433, 0
        %858 = vmatprep.subr.mxu0 0.0
        %859 = vmatpush1.xpose.msra.mxu0 %v835
        %860 = vmatprep.subr.mxu0 0.0
        %861 = vmatpush1.xpose.msra.mxu0 %v838
        %862 = vmatprep.subr.mxu0 0.0
        %863 = vmatpush1.xpose.msra.mxu0 %v841
        %864 = vmatprep.subr.mxu0 0.0
        %865 = vmatpush1.xpose.msra.mxu0 %v844
        %866 = vmatprep.subr.mxu0 0.0
        %867 = vmatpush1.xpose.msra.mxu0 %v847
        %868 = vmatprep.subr.mxu0 0.0
        %869 = vmatpush1.xpose.msra.mxu0 %v850
        %870 = vmatprep.subr.mxu0 0.0
        %871 = vmatpush1.xpose.msra.mxu0 %v853
        %872 = vmatprep.subr.mxu0 0.0
        %873 = vmatpush1.xpose.msra.mxu0 %v856
        %874 = vmatprep.subr.mxu0 0.0
        %875 = vmatpush1.xpose.msra.mxu0 0.0
        %876 = vmatprep.subr.mxu0 0.0
        %877 = vmatpush1.xpose.msra.mxu0 0.0
        %878 = vmatprep.subr.mxu0 0.0
        %879 = vmatpush1.xpose.msra.mxu0 0.0
        %880 = vmatprep.subr.mxu0 0.0
        %881 = vmatpush1.xpose.msra.mxu0 0.0
        %882 = vmatprep.subr.mxu0 0.0
        %883 = vmatpush1.xpose.msra.mxu0 0.0
        %884 = vmatprep.subr.mxu0 0.0
        %885 = vmatpush1.xpose.msra.mxu0 0.0
        %886 = vmatprep.subr.mxu0 0.0
        %887 = vmatpush1.xpose.msra.mxu0 0.0
        %888 = vmatprep.subr.mxu0 0.0
        %889 = vmatpush1.xpose.msra.mxu0 0.0
        %890 = vmatprep.subr.mxu0 0.0
        %891 = vmatpush1.xpose.msra.mxu0 0.0
        %892 = vmatprep.subr.mxu0 0.0
        %893 = vmatpush1.xpose.msra.mxu0 0.0
        %894 = vmatprep.subr.mxu0 0.0
        %895 = vmatpush1.xpose.msra.mxu0 0.0
        %896 = vmatprep.subr.mxu0 0.0
        %897 = vmatpush1.xpose.msra.mxu0 0.0
        %898 = vmatprep.subr.mxu0 0.0
        %899 = vmatpush1.xpose.msra.mxu0 0.0
        %900 = vmatprep.subr.mxu0 0.0
        %901 = vmatpush1.xpose.msra.mxu0 0.0
        %902 = vmatprep.subr.mxu0 0.0
        %903 = vmatpush1.xpose.msra.mxu0 0.0
        %904 = vmatprep.subr.mxu0 0.0
        %905 = vmatpush1.xpose.msra.mxu0 0.0
        %906 = vmatprep.subr.mxu0 0.0
        %907 = vmatpush1.xpose.msra.mxu0 0.0
        %908 = vmatprep.subr.mxu0 0.0
        %909 = vmatpush1.xpose.msra.mxu0 0.0
        %910 = vmatprep.subr.mxu0 0.0
        %911 = vmatpush1.xpose.msra.mxu0 0.0
        %912 = vmatprep.subr.mxu0 0.0
        %913 = vmatpush1.xpose.msra.mxu0 0.0
        %914 = vmatprep.subr.mxu0 0.0
        %915 = vmatpush1.xpose.msra.mxu0 0.0
        %916 = vmatprep.subr.mxu0 0.0
        %917 = vmatpush1.xpose.msra.mxu0 0.0
        %918 = vmatprep.subr.mxu0 0.0
        %919 = vmatpush1.xpose.msra.mxu0 0.0
        %920 = vmatprep.subr.mxu0 0.0
        %921 = vmatpush1.xpose.msra.mxu0 0.0
        %922 = vmatprep.mubr.f32.mxu0 0.0
        %923 = vmatmul.mubr.f32.gmra.mrb[0].mxu0 %v832
        %v924 = vpop.f32.mrb[0].mxu0
        %v925 = vadd.f32 0.0, %v924
        %v926 = vpop.f32.mrb[0].mxu0
        %927 = vdwg.mxu0
        %v929 = vsel %vm539, %v398, 0
        %v932 = vsel %vm539, %v434, 0
        %v935 = vsel %vm539, %v435, 0
        %v938 = vsel %vm539, %v436, 0
        %v941 = vsel %vm539, %v437, 0
        %v944 = vsel %vm539, %v438, 0
        %v947 = vsel %vm539, %v439, 0
        %v950 = vsel %vm539, %v440, 0
        %v953 = vsel %vm539, %v441, 0
        %955 = vmatprep.subr.mxu0 0.0
        %956 = vmatpush1.xpose.msra.mxu0 %v932
        %957 = vmatprep.subr.mxu0 0.0
        %958 = vmatpush1.xpose.msra.mxu0 %v935
        %959 = vmatprep.subr.mxu0 0.0
        %960 = vmatpush1.xpose.msra.mxu0 %v938
        %961 = vmatprep.subr.mxu0 0.0
        %962 = vmatpush1.xpose.msra.mxu0 %v941
        %963 = vmatprep.subr.mxu0 0.0
        %964 = vmatpush1.xpose.msra.mxu0 %v944
        %965 = vmatprep.subr.mxu0 0.0
        %966 = vmatpush1.xpose.msra.mxu0 %v947
        %967 = vmatprep.subr.mxu0 0.0
        %968 = vmatpush1.xpose.msra.mxu0 %v950
        %969 = vmatprep.subr.mxu0 0.0
        %970 = vmatpush1.xpose.msra.mxu0 %v953
        %971 = vmatprep.subr.mxu0 0.0
        %972 = vmatpush1.xpose.msra.mxu0 0.0
        %973 = vmatprep.subr.mxu0 0.0
        %974 = vmatpush1.xpose.msra.mxu0 0.0
        %975 = vmatprep.subr.mxu0 0.0
        %976 = vmatpush1.xpose.msra.mxu0 0.0
        %977 = vmatprep.subr.mxu0 0.0
        %978 = vmatpush1.xpose.msra.mxu0 0.0
        %979 = vmatprep.subr.mxu0 0.0
        %980 = vmatpush1.xpose.msra.mxu0 0.0
        %981 = vmatprep.subr.mxu0 0.0
        %982 = vmatpush1.xpose.msra.mxu0 0.0
        %983 = vmatprep.subr.mxu0 0.0
        %984 = vmatpush1.xpose.msra.mxu0 0.0
        %985 = vmatprep.subr.mxu0 0.0
        %986 = vmatpush1.xpose.msra.mxu0 0.0
        %987 = vmatprep.subr.mxu0 0.0
        %988 = vmatpush1.xpose.msra.mxu0 0.0
        %989 = vmatprep.subr.mxu0 0.0
        %990 = vmatpush1.xpose.msra.mxu0 0.0
        %991 = vmatprep.subr.mxu0 0.0
        %992 = vmatpush1.xpose.msra.mxu0 0.0
        %993 = vmatprep.subr.mxu0 0.0
        %994 = vmatpush1.xpose.msra.mxu0 0.0
        %995 = vmatprep.subr.mxu0 0.0
        %996 = vmatpush1.xpose.msra.mxu0 0.0
        %997 = vmatprep.subr.mxu0 0.0
        %998 = vmatpush1.xpose.msra.mxu0 0.0
        %999 = vmatprep.subr.mxu0 0.0
        %1000 = vmatpush1.xpose.msra.mxu0 0.0
        %1001 = vmatprep.subr.mxu0 0.0
        %1002 = vmatpush1.xpose.msra.mxu0 0.0
        %1003 = vmatprep.subr.mxu0 0.0
        %1004 = vmatpush1.xpose.msra.mxu0 0.0
        %1005 = vmatprep.subr.mxu0 0.0
        %1006 = vmatpush1.xpose.msra.mxu0 0.0
        %1007 = vmatprep.subr.mxu0 0.0
        %1008 = vmatpush1.xpose.msra.mxu0 0.0
        %1009 = vmatprep.subr.mxu0 0.0
        %1010 = vmatpush1.xpose.msra.mxu0 0.0
        %1011 = vmatprep.subr.mxu0 0.0
        %1012 = vmatpush1.xpose.msra.mxu0 0.0
        %1013 = vmatprep.subr.mxu0 0.0
        %1014 = vmatpush1.xpose.msra.mxu0 0.0
        %1015 = vmatprep.subr.mxu0 0.0
        %1016 = vmatpush1.xpose.msra.mxu0 0.0
        %1017 = vmatprep.subr.mxu0 0.0
        %1018 = vmatpush1.xpose.msra.mxu0 0.0
        %1019 = vmatprep.mubr.f32.mxu0 0.0
        %1020 = vmatmul.mubr.f32.gmra.mrb[0].mxu0 %v929
        %v1021 = vpop.f32.mrb[0].mxu0
        %v1022 = vadd.f32 0.0, %v1021
        %v1023 = vpop.f32.mrb[0].mxu0
        %1024 = vdwg.mxu0
        %v1026 = vsel %vm539, %v399, 0
        %v1029 = vsel %vm539, %v442, 0
        %v1032 = vsel %vm539, %v443, 0
        %v1035 = vsel %vm539, %v444, 0
        %v1038 = vsel %vm539, %v445, 0
        %v1041 = vsel %vm539, %v446, 0
        %v1044 = vsel %vm539, %v447, 0
        %v1047 = vsel %vm539, %v448, 0
        %v1050 = vsel %vm539, %v449, 0
        %1052 = vmatprep.subr.mxu0 0.0
        %1053 = vmatpush1.xpose.msra.mxu0 %v1029
        %1054 = vmatprep.subr.mxu0 0.0
        %1055 = vmatpush1.xpose.msra.mxu0 %v1032
        %1056 = vmatprep.subr.mxu0 0.0
        %1057 = vmatpush1.xpose.msra.mxu0 %v1035
        %1058 = vmatprep.subr.mxu0 0.0
        %1059 = vmatpush1.xpose.msra.mxu0 %v1038
        %1060 = vmatprep.subr.mxu0 0.0
        %1061 = vmatpush1.xpose.msra.mxu0 %v1041
        %1062 = vmatprep.subr.mxu0 0.0
        %1063 = vmatpush1.xpose.msra.mxu0 %v1044
        %1064 = vmatprep.subr.mxu0 0.0
        %1065 = vmatpush1.xpose.msra.mxu0 %v1047
        %1066 = vmatprep.subr.mxu0 0.0
        %1067 = vmatpush1.xpose.msra.mxu0 %v1050
        %1068 = vmatprep.subr.mxu0 0.0
        %1069 = vmatpush1.xpose.msra.mxu0 0.0
        %1070 = vmatprep.subr.mxu0 0.0
        %1071 = vmatpush1.xpose.msra.mxu0 0.0
        %1072 = vmatprep.subr.mxu0 0.0
        %1073 = vmatpush1.xpose.msra.mxu0 0.0
        %1074 = vmatprep.subr.mxu0 0.0
        %1075 = vmatpush1.xpose.msra.mxu0 0.0
        %1076 = vmatprep.subr.mxu0 0.0
        %1077 = vmatpush1.xpose.msra.mxu0 0.0
        %1078 = vmatprep.subr.mxu0 0.0
        %1079 = vmatpush1.xpose.msra.mxu0 0.0
        %1080 = vmatprep.subr.mxu0 0.0
        %1081 = vmatpush1.xpose.msra.mxu0 0.0
        %1082 = vmatprep.subr.mxu0 0.0
        %1083 = vmatpush1.xpose.msra.mxu0 0.0
        %1084 = vmatprep.subr.mxu0 0.0
        %1085 = vmatpush1.xpose.msra.mxu0 0.0
        %1086 = vmatprep.subr.mxu0 0.0
        %1087 = vmatpush1.xpose.msra.mxu0 0.0
        %1088 = vmatprep.subr.mxu0 0.0
        %1089 = vmatpush1.xpose.msra.mxu0 0.0
        %1090 = vmatprep.subr.mxu0 0.0
        %1091 = vmatpush1.xpose.msra.mxu0 0.0
        %1092 = vmatprep.subr.mxu0 0.0
        %1093 = vmatpush1.xpose.msra.mxu0 0.0
        %1094 = vmatprep.subr.mxu0 0.0
        %1095 = vmatpush1.xpose.msra.mxu0 0.0
        %1096 = vmatprep.subr.mxu0 0.0
        %1097 = vmatpush1.xpose.msra.mxu0 0.0
        %1098 = vmatprep.subr.mxu0 0.0
        %1099 = vmatpush1.xpose.msra.mxu0 0.0
        %1100 = vmatprep.subr.mxu0 0.0
        %1101 = vmatpush1.xpose.msra.mxu0 0.0
        %1102 = vmatprep.subr.mxu0 0.0
        %1103 = vmatpush1.xpose.msra.mxu0 0.0
        %1104 = vmatprep.subr.mxu0 0.0
        %1105 = vmatpush1.xpose.msra.mxu0 0.0
        %1106 = vmatprep.subr.mxu0 0.0
        %1107 = vmatpush1.xpose.msra.mxu0 0.0
        %1108 = vmatprep.subr.mxu0 0.0
        %1109 = vmatpush1.xpose.msra.mxu0 0.0
        %1110 = vmatprep.subr.mxu0 0.0
        %1111 = vmatpush1.xpose.msra.mxu0 0.0
        %1112 = vmatprep.subr.mxu0 0.0
        %1113 = vmatpush1.xpose.msra.mxu0 0.0
        %1114 = vmatprep.subr.mxu0 0.0
        %1115 = vmatpush1.xpose.msra.mxu0 0.0
        %1116 = vmatprep.mubr.f32.mxu0 0.0
        %1117 = vmatmul.mubr.f32.gmra.mrb[0].mxu0 %v1026
        %v1118 = vpop.f32.mrb[0].mxu0
        %v1119 = vadd.f32 0.0, %v1118
        %v1120 = vpop.f32.mrb[0].mxu0
        %1121 = vdwg.mxu0
        %v1123 = vsel %vm539, %v400, 0
        %v1126 = vsel %vm539, %v450, 0
        %v1129 = vsel %vm539, %v451, 0
        %v1132 = vsel %vm539, %v452, 0
        %v1135 = vsel %vm539, %v453, 0
        %v1138 = vsel %vm539, %v454, 0
        %v1141 = vsel %vm539, %v455, 0
        %v1144 = vsel %vm539, %v456, 0
        %v1147 = vsel %vm539, %v457, 0
        %1149 = vmatprep.subr.mxu0 0.0
        %1150 = vmatpush1.xpose.msra.mxu0 %v1126
        %1151 = vmatprep.subr.mxu0 0.0
        %1152 = vmatpush1.xpose.msra.mxu0 %v1129
        %1153 = vmatprep.subr.mxu0 0.0
        %1154 = vmatpush1.xpose.msra.mxu0 %v1132
        %1155 = vmatprep.subr.mxu0 0.0
        %1156 = vmatpush1.xpose.msra.mxu0 %v1135
        %1157 = vmatprep.subr.mxu0 0.0
        %1158 = vmatpush1.xpose.msra.mxu0 %v1138
        %1159 = vmatprep.subr.mxu0 0.0
        %1160 = vmatpush1.xpose.msra.mxu0 %v1141
        %1161 = vmatprep.subr.mxu0 0.0
        %1162 = vmatpush1.xpose.msra.mxu0 %v1144
        %1163 = vmatprep.subr.mxu0 0.0
        %1164 = vmatpush1.xpose.msra.mxu0 %v1147
        %1165 = vmatprep.subr.mxu0 0.0
        %1166 = vmatpush1.xpose.msra.mxu0 0.0
        %1167 = vmatprep.subr.mxu0 0.0
        %1168 = vmatpush1.xpose.msra.mxu0 0.0
        %1169 = vmatprep.subr.mxu0 0.0
        %1170 = vmatpush1.xpose.msra.mxu0 0.0
        %1171 = vmatprep.subr.mxu0 0.0
        %1172 = vmatpush1.xpose.msra.mxu0 0.0
        %1173 = vmatprep.subr.mxu0 0.0
        %1174 = vmatpush1.xpose.msra.mxu0 0.0
        %1175 = vmatprep.subr.mxu0 0.0
        %1176 = vmatpush1.xpose.msra.mxu0 0.0
        %1177 = vmatprep.subr.mxu0 0.0
        %1178 = vmatpush1.xpose.msra.mxu0 0.0
        %1179 = vmatprep.subr.mxu0 0.0
        %1180 = vmatpush1.xpose.msra.mxu0 0.0
        %1181 = vmatprep.subr.mxu0 0.0
        %1182 = vmatpush1.xpose.msra.mxu0 0.0
        %1183 = vmatprep.subr.mxu0 0.0
        %1184 = vmatpush1.xpose.msra.mxu0 0.0
        %1185 = vmatprep.subr.mxu0 0.0
        %1186 = vmatpush1.xpose.msra.mxu0 0.0
        %1187 = vmatprep.subr.mxu0 0.0
        %1188 = vmatpush1.xpose.msra.mxu0 0.0
        %1189 = vmatprep.subr.mxu0 0.0
        %1190 = vmatpush1.xpose.msra.mxu0 0.0
        %1191 = vmatprep.subr.mxu0 0.0
        %1192 = vmatpush1.xpose.msra.mxu0 0.0
        %1193 = vmatprep.subr.mxu0 0.0
        %1194 = vmatpush1.xpose.msra.mxu0 0.0
        %1195 = vmatprep.subr.mxu0 0.0
        %1196 = vmatpush1.xpose.msra.mxu0 0.0
        %1197 = vmatprep.subr.mxu0 0.0
        %1198 = vmatpush1.xpose.msra.mxu0 0.0
        %1199 = vmatprep.subr.mxu0 0.0
        %1200 = vmatpush1.xpose.msra.mxu0 0.0
        %1201 = vmatprep.subr.mxu0 0.0
        %1202 = vmatpush1.xpose.msra.mxu0 0.0
        %1203 = vmatprep.subr.mxu0 0.0
        %1204 = vmatpush1.xpose.msra.mxu0 0.0
        %1205 = vmatprep.subr.mxu0 0.0
        %1206 = vmatpush1.xpose.msra.mxu0 0.0
        %1207 = vmatprep.subr.mxu0 0.0
        %1208 = vmatpush1.xpose.msra.mxu0 0.0
        %1209 = vmatprep.subr.mxu0 0.0
        %1210 = vmatpush1.xpose.msra.mxu0 0.0
        %1211 = vmatprep.subr.mxu0 0.0
        %1212 = vmatpush1.xpose.msra.mxu0 0.0
        %1213 = vmatprep.mubr.f32.mxu0 0.0
        %1214 = vmatmul.mubr.f32.gmra.mrb[0].mxu0 %v1123
        %v1215 = vpop.f32.mrb[0].mxu0
        %v1216 = vadd.f32 0.0, %v1215
        %v1217 = vpop.f32.mrb[0].mxu0
        %1218 = vdwg.mxu0
        %v1220 = vsel %vm539, %v401, 0
        %v1223 = vsel %vm539, %v458, 0
        %v1226 = vsel %vm539, %v459, 0
        %v1229 = vsel %vm539, %v460, 0
        %v1232 = vsel %vm539, %v461, 0
        %v1235 = vsel %vm539, %v462, 0
        %v1238 = vsel %vm539, %v463, 0
        %v1241 = vsel %vm539, %v464, 0
        %v1244 = vsel %vm539, %v465, 0
        %1246 = vmatprep.subr.mxu0 0.0
        %1247 = vmatpush1.xpose.msra.mxu0 %v1223
        %1248 = vmatprep.subr.mxu0 0.0
        %1249 = vmatpush1.xpose.msra.mxu0 %v1226
        %1250 = vmatprep.subr.mxu0 0.0
        %1251 = vmatpush1.xpose.msra.mxu0 %v1229
        %1252 = vmatprep.subr.mxu0 0.0
        %1253 = vmatpush1.xpose.msra.mxu0 %v1232
        %1254 = vmatprep.subr.mxu0 0.0
        %1255 = vmatpush1.xpose.msra.mxu0 %v1235
        %1256 = vmatprep.subr.mxu0 0.0
        %1257 = vmatpush1.xpose.msra.mxu0 %v1238
        %1258 = vmatprep.subr.mxu0 0.0
        %1259 = vmatpush1.xpose.msra.mxu0 %v1241
        %1260 = vmatprep.subr.mxu0 0.0
        %1261 = vmatpush1.xpose.msra.mxu0 %v1244
        %1262 = vmatprep.subr.mxu0 0.0
        %1263 = vmatpush1.xpose.msra.mxu0 0.0
        %1264 = vmatprep.subr.mxu0 0.0
        %1265 = vmatpush1.xpose.msra.mxu0 0.0
        %1266 = vmatprep.subr.mxu0 0.0
        %1267 = vmatpush1.xpose.msra.mxu0 0.0
        %1268 = vmatprep.subr.mxu0 0.0
        %1269 = vmatpush1.xpose.msra.mxu0 0.0
        %1270 = vmatprep.subr.mxu0 0.0
        %1271 = vmatpush1.xpose.msra.mxu0 0.0
        %1272 = vmatprep.subr.mxu0 0.0
        %1273 = vmatpush1.xpose.msra.mxu0 0.0
        %1274 = vmatprep.subr.mxu0 0.0
        %1275 = vmatpush1.xpose.msra.mxu0 0.0
        %1276 = vmatprep.subr.mxu0 0.0
        %1277 = vmatpush1.xpose.msra.mxu0 0.0
        %1278 = vmatprep.subr.mxu0 0.0
        %1279 = vmatpush1.xpose.msra.mxu0 0.0
        %1280 = vmatprep.subr.mxu0 0.0
        %1281 = vmatpush1.xpose.msra.mxu0 0.0
        %1282 = vmatprep.subr.mxu0 0.0
        %1283 = vmatpush1.xpose.msra.mxu0 0.0
        %1284 = vmatprep.subr.mxu0 0.0
        %1285 = vmatpush1.xpose.msra.mxu0 0.0
        %1286 = vmatprep.subr.mxu0 0.0
        %1287 = vmatpush1.xpose.msra.mxu0 0.0
        %1288 = vmatprep.subr.mxu0 0.0
        %1289 = vmatpush1.xpose.msra.mxu0 0.0
        %1290 = vmatprep.subr.mxu0 0.0
        %1291 = vmatpush1.xpose.msra.mxu0 0.0
        %1292 = vmatprep.subr.mxu0 0.0
        %1293 = vmatpush1.xpose.msra.mxu0 0.0
        %1294 = vmatprep.subr.mxu0 0.0
        %1295 = vmatpush1.xpose.msra.mxu0 0.0
        %1296 = vmatprep.subr.mxu0 0.0
        %1297 = vmatpush1.xpose.msra.mxu0 0.0
        %1298 = vmatprep.subr.mxu0 0.0
        %1299 = vmatpush1.xpose.msra.mxu0 0.0
        %1300 = vmatprep.subr.mxu0 0.0
        %1301 = vmatpush1.xpose.msra.mxu0 0.0
        %1302 = vmatprep.subr.mxu0 0.0
        %1303 = vmatpush1.xpose.msra.mxu0 0.0
        %1304 = vmatprep.subr.mxu0 0.0
        %1305 = vmatpush1.xpose.msra.mxu0 0.0
        %1306 = vmatprep.subr.mxu0 0.0
        %1307 = vmatpush1.xpose.msra.mxu0 0.0
        %1308 = vmatprep.subr.mxu0 0.0
        %1309 = vmatpush1.xpose.msra.mxu0 0.0
        %1310 = vmatprep.mubr.f32.mxu0 0.0
        %1311 = vmatmul.mubr.f32.gmra.mrb[0].mxu0 %v1220
        %v1312 = vpop.f32.mrb[0].mxu0
        %v1313 = vadd.f32 0.0, %v1312
        %v1314 = vpop.f32.mrb[0].mxu0
        %1315 = vdwg.mxu0
        %v1316 = vmul.f32 %v634, 0.044194173
        %v1317 = vmul.f32 %v731, 0.044194173
        %v1318 = vmul.f32 %v828, 0.044194173
        %v1319 = vmul.f32 %v925, 0.044194173
        %v1320 = vmul.f32 %v1022, 0.044194173
        %v1321 = vmul.f32 %v1119, 0.044194173
        %v1322 = vmul.f32 %v1216, 0.044194173
        %v1323 = vmul.f32 %v1313, 0.044194173
        %v1324 = vsel %vm539, %v1316, -inf
        %1325 = vmax.xlane.f32.xlu0 %v1324
        %v1326 = vpop.xlane.xlu0 %1325
        %v1327 = vsel %vm539, %v1317, -inf
        %1328 = vmax.xlane.f32.xlu0 %v1327
        %v1329 = vpop.xlane.xlu0 %1328
        %v1330 = vsel %vm539, %v1318, -inf
        %1331 = vmax.xlane.f32.xlu0 %v1330
        %v1332 = vpop.xlane.xlu0 %1331
        %v1333 = vsel %vm539, %v1319, -inf
        %1334 = vmax.xlane.f32.xlu0 %v1333
        %v1335 = vpop.xlane.xlu0 %1334
        %v1336 = vsel %vm539, %v1320, -inf
        %1337 = vmax.xlane.f32.xlu0 %v1336
        %v1338 = vpop.xlane.xlu0 %1337
        %v1339 = vsel %vm539, %v1321, -inf
        %1340 = vmax.xlane.f32.xlu0 %v1339
        %v1341 = vpop.xlane.xlu0 %1340
        %v1342 = vsel %vm539, %v1322, -inf
        %1343 = vmax.xlane.f32.xlu0 %v1342
        %v1344 = vpop.xlane.xlu0 %1343
        %v1345 = vsel %vm539, %v1323, -inf
        %1346 = vmax.xlane.f32.xlu0 %v1345
        %v1347 = vpop.xlane.xlu0 %1346
        %v1348 = vsub.f32 %v1316, %v1326
        %v1349 = vsub.f32 %v1317, %v1329
        %v1350 = vsub.f32 %v1318, %v1332
        %v1351 = vsub.f32 %v1319, %v1335
        %v1352 = vsub.f32 %v1320, %v1338
        %v1353 = vsub.f32 %v1321, %v1341
        %v1354 = vsub.f32 %v1322, %v1344
        %v1355 = vsub.f32 %v1323, %v1347
        %v1356 = vmul.f32 %v1348, 1.442695
        %v1357 = vpow.pop %v1356
        %v1358 = vmul.f32 %v1349, 1.442695
        %v1359 = vpow.pop %v1358
        %v1360 = vmul.f32 %v1350, 1.442695
        %v1361 = vpow.pop %v1360
        %v1362 = vmul.f32 %v1351, 1.442695
        %v1363 = vpow.pop %v1362
        %v1364 = vmul.f32 %v1352, 1.442695
        %v1365 = vpow.pop %v1364
        %v1366 = vmul.f32 %v1353, 1.442695
        %v1367 = vpow.pop %v1366
        %v1368 = vmul.f32 %v1354, 1.442695
        %v1369 = vpow.pop %v1368
        %v1370 = vmul.f32 %v1355, 1.442695
        %v1371 = vpow.pop %v1370
        %v1372 = vsel %vm539, %v1357, 0.0
        %1373 = vadd.xlane.f32.xlu0 %v1372
        %v1374 = vpop.xlane.xlu0 %1373
        %v1375 = vsel %vm539, %v1359, 0.0
        %1376 = vadd.xlane.f32.xlu0 %v1375
        %v1377 = vpop.xlane.xlu0 %1376
        %v1378 = vsel %vm539, %v1361, 0.0
        %1379 = vadd.xlane.f32.xlu0 %v1378
        %v1380 = vpop.xlane.xlu0 %1379
        %v1381 = vsel %vm539, %v1363, 0.0
        %1382 = vadd.xlane.f32.xlu0 %v1381
        %v1383 = vpop.xlane.xlu0 %1382
        %v1384 = vsel %vm539, %v1365, 0.0
        %1385 = vadd.xlane.f32.xlu0 %v1384
        %v1386 = vpop.xlane.xlu0 %1385
        %v1387 = vsel %vm539, %v1367, 0.0
        %1388 = vadd.xlane.f32.xlu0 %v1387
        %v1389 = vpop.xlane.xlu0 %1388
        %v1390 = vsel %vm539, %v1369, 0.0
        %1391 = vadd.xlane.f32.xlu0 %v1390
        %v1392 = vpop.xlane.xlu0 %1391
        %v1393 = vsel %vm539, %v1371, 0.0
        %1394 = vadd.xlane.f32.xlu0 %v1393
        %v1395 = vpop.xlane.xlu0 %1394
        %v1396 = vrcp.pop %v1374
        %v1397 = vmul.f32 %v1357, %v1396
        %v1398 = vrcp.pop %v1377
        %v1399 = vmul.f32 %v1359, %v1398
        %v1400 = vrcp.pop %v1380
        %v1401 = vmul.f32 %v1361, %v1400
        %v1402 = vrcp.pop %v1383
        %v1403 = vmul.f32 %v1363, %v1402
        %v1404 = vrcp.pop %v1386
        %v1405 = vmul.f32 %v1365, %v1404
        %v1406 = vrcp.pop %v1389
        %v1407 = vmul.f32 %v1367, %v1406
        %v1408 = vrcp.pop %v1392
        %v1409 = vmul.f32 %v1369, %v1408
        %v1410 = vrcp.pop %v1395
        %v1411 = vmul.f32 %v1371, %v1410
        %vm1412 = vcmp.ge.f32.partialorder %v531, 0.1
        %vm1413 = vcmp.ge.f32.partialorder %v532, 0.1
        %vm1414 = vcmp.ge.f32.partialorder %v533, 0.1
        %vm1415 = vcmp.ge.f32.partialorder %v534, 0.1
        %vm1416 = vcmp.ge.f32.partialorder %v535, 0.1
        %vm1417 = vcmp.ge.f32.partialorder %v536, 0.1
        %vm1418 = vcmp.ge.f32.partialorder %v537, 0.1
        %vm1419 = vcmp.ge.f32.partialorder %v538, 0.1
        %v1420 = vmul.f32 %v1397, 1.1111112
        %v1421 = vmul.f32 %v1399, 1.1111112
        %v1422 = vmul.f32 %v1401, 1.1111112
        %v1423 = vmul.f32 %v1403, 1.1111112
        %v1424 = vmul.f32 %v1405, 1.1111112
        %v1425 = vmul.f32 %v1407, 1.1111112
        %v1426 = vmul.f32 %v1409, 1.1111112
        %v1427 = vmul.f32 %v1411, 1.1111112
        %v1428 = vsel %vm1412, %v1420, 0.0
        %v1429 = vsel %vm1413, %v1421, 0.0
        %v1430 = vsel %vm1414, %v1422, 0.0
        %v1431 = vsel %vm1415, %v1423, 0.0
        %v1432 = vsel %vm1416, %v1424, 0.0
        %v1433 = vsel %vm1417, %v1425, 0.0
        %v1434 = vsel %vm1418, %v1426, 0.0
        %v1435 = vsel %vm1419, %v1427, 0.0
        %v1437 = vsel %vm539, %v1428, 0
        %1439 = vmatprep.subr.mxu0 0.0
        %1440 = vmatpush1.msra.mxu0 %v466
        %1441 = vmatprep.subr.mxu0 0.0
        %1442 = vmatpush1.msra.mxu0 %v467
        %1443 = vmatprep.subr.mxu0 0.0
        %1444 = vmatpush1.msra.mxu0 %v468
        %1445 = vmatprep.subr.mxu0 0.0
        %1446 = vmatpush1.msra.mxu0 %v469
        %1447 = vmatprep.subr.mxu0 0.0
        %1448 = vmatpush1.msra.mxu0 %v470
        %1449 = vmatprep.subr.mxu0 0.0
        %1450 = vmatpush1.msra.mxu0 %v471
        %1451 = vmatprep.subr.mxu0 0.0
        %1452 = vmatpush1.msra.mxu0 %v472
        %1453 = vmatprep.subr.mxu0 0.0
        %1454 = vmatpush1.msra.mxu0 %v473
        %1455 = vmatprep.subr.mxu0 0.0
        %1456 = vmatpush1.msra.mxu0 0.0
        %1457 = vmatprep.subr.mxu0 0.0
        %1458 = vmatpush1.msra.mxu0 0.0
        %1459 = vmatprep.subr.mxu0 0.0
        %1460 = vmatpush1.msra.mxu0 0.0
        %1461 = vmatprep.subr.mxu0 0.0
        %1462 = vmatpush1.msra.mxu0 0.0
        %1463 = vmatprep.subr.mxu0 0.0
        %1464 = vmatpush1.msra.mxu0 0.0
        %1465 = vmatprep.subr.mxu0 0.0
        %1466 = vmatpush1.msra.mxu0 0.0
        %1467 = vmatprep.subr.mxu0 0.0
        %1468 = vmatpush1.msra.mxu0 0.0
        %1469 = vmatprep.subr.mxu0 0.0
        %1470 = vmatpush1.msra.mxu0 0.0
        %1471 = vmatprep.subr.mxu0 0.0
        %1472 = vmatpush1.msra.mxu0 0.0
        %1473 = vmatprep.subr.mxu0 0.0
        %1474 = vmatpush1.msra.mxu0 0.0
        %1475 = vmatprep.subr.mxu0 0.0
        %1476 = vmatpush1.msra.mxu0 0.0
        %1477 = vmatprep.subr.mxu0 0.0
        %1478 = vmatpush1.msra.mxu0 0.0
        %1479 = vmatprep.subr.mxu0 0.0
        %1480 = vmatpush1.msra.mxu0 0.0
        %1481 = vmatprep.subr.mxu0 0.0
        %1482 = vmatpush1.msra.mxu0 0.0
        %1483 = vmatprep.subr.mxu0 0.0
        %1484 = vmatpush1.msra.mxu0 0.0
        %1485 = vmatprep.subr.mxu0 0.0
        %1486 = vmatpush1.msra.mxu0 0.0
        %1487 = vmatprep.subr.mxu0 0.0
        %1488 = vmatpush1.msra.mxu0 0.0
        %1489 = vmatprep.subr.mxu0 0.0
        %1490 = vmatpush1.msra.mxu0 0.0
        %1491 = vmatprep.subr.mxu0 0.0
        %1492 = vmatpush1.msra.mxu0 0.0
        %1493 = vmatprep.subr.mxu0 0.0
        %1494 = vmatpush1.msra.mxu0 0.0
        %1495 = vmatprep.subr.mxu0 0.0
        %1496 = vmatpush1.msra.mxu0 0.0
        %1497 = vmatprep.subr.mxu0 0.0
        %1498 = vmatpush1.msra.mxu0 0.0
        %1499 = vmatprep.subr.mxu0 0.0
        %1500 = vmatpush1.msra.mxu0 0.0
        %1501 = vmatprep.subr.mxu0 0.0
        %1502 = vmatpush1.msra.mxu0 0.0
        %1503 = vmatprep.mubr.f32.mxu0 0.0
        %1504 = vmatmul.mubr.f32.gmra.mrb[0].mxu0 %v1437
        %v1505 = vpop.f32.mrb[0].mxu0
        %v1506 = vadd.f32 0.0, %v1505
        %v1507 = vpop.f32.mrb[0].mxu0
        %1508 = vdwg.mxu0
        %v1510 = vsel %vm539, %v1429, 0
        %1512 = vmatprep.subr.mxu0 0.0
        %1513 = vmatpush1.msra.mxu0 %v474
        %1514 = vmatprep.subr.mxu0 0.0
        %1515 = vmatpush1.msra.mxu0 %v475
        %1516 = vmatprep.subr.mxu0 0.0
        %1517 = vmatpush1.msra.mxu0 %v476
        %1518 = vmatprep.subr.mxu0 0.0
        %1519 = vmatpush1.msra.mxu0 %v477
        %1520 = vmatprep.subr.mxu0 0.0
        %1521 = vmatpush1.msra.mxu0 %v478
        %1522 = vmatprep.subr.mxu0 0.0
        %1523 = vmatpush1.msra.mxu0 %v479
        %1524 = vmatprep.subr.mxu0 0.0
        %1525 = vmatpush1.msra.mxu0 %v480
        %1526 = vmatprep.subr.mxu0 0.0
        %1527 = vmatpush1.msra.mxu0 %v481
        %1528 = vmatprep.subr.mxu0 0.0
        %1529 = vmatpush1.msra.mxu0 0.0
        %1530 = vmatprep.subr.mxu0 0.0
        %1531 = vmatpush1.msra.mxu0 0.0
        %1532 = vmatprep.subr.mxu0 0.0
        %1533 = vmatpush1.msra.mxu0 0.0
        %1534 = vmatprep.subr.mxu0 0.0
        %1535 = vmatpush1.msra.mxu0 0.0
        %1536 = vmatprep.subr.mxu0 0.0
        %1537 = vmatpush1.msra.mxu0 0.0
        %1538 = vmatprep.subr.mxu0 0.0
        %1539 = vmatpush1.msra.mxu0 0.0
        %1540 = vmatprep.subr.mxu0 0.0
        %1541 = vmatpush1.msra.mxu0 0.0
        %1542 = vmatprep.subr.mxu0 0.0
        %1543 = vmatpush1.msra.mxu0 0.0
        %1544 = vmatprep.subr.mxu0 0.0
        %1545 = vmatpush1.msra.mxu0 0.0
        %1546 = vmatprep.subr.mxu0 0.0
        %1547 = vmatpush1.msra.mxu0 0.0
        %1548 = vmatprep.subr.mxu0 0.0
        %1549 = vmatpush1.msra.mxu0 0.0
        %1550 = vmatprep.subr.mxu0 0.0
        %1551 = vmatpush1.msra.mxu0 0.0
        %1552 = vmatprep.subr.mxu0 0.0
        %1553 = vmatpush1.msra.mxu0 0.0
        %1554 = vmatprep.subr.mxu0 0.0
        %1555 = vmatpush1.msra.mxu0 0.0
        %1556 = vmatprep.subr.mxu0 0.0
        %1557 = vmatpush1.msra.mxu0 0.0
        %1558 = vmatprep.subr.mxu0 0.0
        %1559 = vmatpush1.msra.mxu0 0.0
        %1560 = vmatprep.subr.mxu0 0.0
        %1561 = vmatpush1.msra.mxu0 0.0
        %1562 = vmatprep.subr.mxu0 0.0
        %1563 = vmatpush1.msra.mxu0 0.0
        %1564 = vmatprep.subr.mxu0 0.0
        %1565 = vmatpush1.msra.mxu0 0.0
        %1566 = vmatprep.subr.mxu0 0.0
        %1567 = vmatpush1.msra.mxu0 0.0
        %1568 = vmatprep.subr.mxu0 0.0
        %1569 = vmatpush1.msra.mxu0 0.0
        %1570 = vmatprep.subr.mxu0 0.0
        %1571 = vmatpush1.msra.mxu0 0.0
        %1572 = vmatprep.subr.mxu0 0.0
        %1573 = vmatpush1.msra.mxu0 0.0
        %1574 = vmatprep.subr.mxu0 0.0
        %1575 = vmatpush1.msra.mxu0 0.0
        %1576 = vmatprep.mubr.f32.mxu0 0.0
        %1577 = vmatmul.mubr.f32.gmra.mrb[0].mxu0 %v1510
        %v1578 = vpop.f32.mrb[0].mxu0
        %v1579 = vadd.f32 0.0, %v1578
        %v1580 = vpop.f32.mrb[0].mxu0
        %1581 = vdwg.mxu0
        %v1583 = vsel %vm539, %v1430, 0
        %1585 = vmatprep.subr.mxu0 0.0
        %1586 = vmatpush1.msra.mxu0 %v482
        %1587 = vmatprep.subr.mxu0 0.0
        %1588 = vmatpush1.msra.mxu0 %v483
        %1589 = vmatprep.subr.mxu0 0.0
        %1590 = vmatpush1.msra.mxu0 %v484
        %1591 = vmatprep.subr.mxu0 0.0
        %1592 = vmatpush1.msra.mxu0 %v485
        %1593 = vmatprep.subr.mxu0 0.0
        %1594 = vmatpush1.msra.mxu0 %v486
        %1595 = vmatprep.subr.mxu0 0.0
        %1596 = vmatpush1.msra.mxu0 %v487
        %1597 = vmatprep.subr.mxu0 0.0
        %1598 = vmatpush1.msra.mxu0 %v488
        %1599 = vmatprep.subr.mxu0 0.0
        %1600 = vmatpush1.msra.mxu0 %v489
        %1601 = vmatprep.subr.mxu0 0.0
        %1602 = vmatpush1.msra.mxu0 0.0
        %1603 = vmatprep.subr.mxu0 0.0
        %1604 = vmatpush1.msra.mxu0 0.0
        %1605 = vmatprep.subr.mxu0 0.0
        %1606 = vmatpush1.msra.mxu0 0.0
        %1607 = vmatprep.subr.mxu0 0.0
        %1608 = vmatpush1.msra.mxu0 0.0
        %1609 = vmatprep.subr.mxu0 0.0
        %1610 = vmatpush1.msra.mxu0 0.0
        %1611 = vmatprep.subr.mxu0 0.0
        %1612 = vmatpush1.msra.mxu0 0.0
        %1613 = vmatprep.subr.mxu0 0.0
        %1614 = vmatpush1.msra.mxu0 0.0
        %1615 = vmatprep.subr.mxu0 0.0
        %1616 = vmatpush1.msra.mxu0 0.0
        %1617 = vmatprep.subr.mxu0 0.0
        %1618 = vmatpush1.msra.mxu0 0.0
        %1619 = vmatprep.subr.mxu0 0.0
        %1620 = vmatpush1.msra.mxu0 0.0
        %1621 = vmatprep.subr.mxu0 0.0
        %1622 = vmatpush1.msra.mxu0 0.0
        %1623 = vmatprep.subr.mxu0 0.0
        %1624 = vmatpush1.msra.mxu0 0.0
        %1625 = vmatprep.subr.mxu0 0.0
        %1626 = vmatpush1.msra.mxu0 0.0
        %1627 = vmatprep.subr.mxu0 0.0
        %1628 = vmatpush1.msra.mxu0 0.0
        %1629 = vmatprep.subr.mxu0 0.0
        %1630 = vmatpush1.msra.mxu0 0.0
        %1631 = vmatprep.subr.mxu0 0.0
        %1632 = vmatpush1.msra.mxu0 0.0
        %1633 = vmatprep.subr.mxu0 0.0
        %1634 = vmatpush1.msra.mxu0 0.0
        %1635 = vmatprep.subr.mxu0 0.0
        %1636 = vmatpush1.msra.mxu0 0.0
        %1637 = vmatprep.subr.mxu0 0.0
        %1638 = vmatpush1.msra.mxu0 0.0
        %1639 = vmatprep.subr.mxu0 0.0
        %1640 = vmatpush1.msra.mxu0 0.0
        %1641 = vmatprep.subr.mxu0 0.0
        %1642 = vmatpush1.msra.mxu0 0.0
        %1643 = vmatprep.subr.mxu0 0.0
        %1644 = vmatpush1.msra.mxu0 0.0
        %1645 = vmatprep.subr.mxu0 0.0
        %1646 = vmatpush1.msra.mxu0 0.0
        %1647 = vmatprep.subr.mxu0 0.0
        %1648 = vmatpush1.msra.mxu0 0.0
        %1649 = vmatprep.mubr.f32.mxu0 0.0
        %1650 = vmatmul.mubr.f32.gmra.mrb[0].mxu0 %v1583
        %v1651 = vpop.f32.mrb[0].mxu0
        %v1652 = vadd.f32 0.0, %v1651
        %v1653 = vpop.f32.mrb[0].mxu0
        %1654 = vdwg.mxu0
        %v1656 = vsel %vm539, %v1431, 0
        %1658 = vmatprep.subr.mxu0 0.0
        %1659 = vmatpush1.msra.mxu0 %v490
        %1660 = vmatprep.subr.mxu0 0.0
        %1661 = vmatpush1.msra.mxu0 %v491
        %1662 = vmatprep.subr.mxu0 0.0
        %1663 = vmatpush1.msra.mxu0 %v492
        %1664 = vmatprep.subr.mxu0 0.0
        %1665 = vmatpush1.msra.mxu0 %v493
        %1666 = vmatprep.subr.mxu0 0.0
        %1667 = vmatpush1.msra.mxu0 %v494
        %1668 = vmatprep.subr.mxu0 0.0
        %1669 = vmatpush1.msra.mxu0 %v495
        %1670 = vmatprep.subr.mxu0 0.0
        %1671 = vmatpush1.msra.mxu0 %v496
        %1672 = vmatprep.subr.mxu0 0.0
        %1673 = vmatpush1.msra.mxu0 %v497
        %1674 = vmatprep.subr.mxu0 0.0
        %1675 = vmatpush1.msra.mxu0 0.0
        %1676 = vmatprep.subr.mxu0 0.0
        %1677 = vmatpush1.msra.mxu0 0.0
        %1678 = vmatprep.subr.mxu0 0.0
        %1679 = vmatpush1.msra.mxu0 0.0
        %1680 = vmatprep.subr.mxu0 0.0
        %1681 = vmatpush1.msra.mxu0 0.0
        %1682 = vmatprep.subr.mxu0 0.0
        %1683 = vmatpush1.msra.mxu0 0.0
        %1684 = vmatprep.subr.mxu0 0.0
        %1685 = vmatpush1.msra.mxu0 0.0
        %1686 = vmatprep.subr.mxu0 0.0
        %1687 = vmatpush1.msra.mxu0 0.0
        %1688 = vmatprep.subr.mxu0 0.0
        %1689 = vmatpush1.msra.mxu0 0.0
        %1690 = vmatprep.subr.mxu0 0.0
        %1691 = vmatpush1.msra.mxu0 0.0
        %1692 = vmatprep.subr.mxu0 0.0
        %1693 = vmatpush1.msra.mxu0 0.0
        %1694 = vmatprep.subr.mxu0 0.0
        %1695 = vmatpush1.msra.mxu0 0.0
        %1696 = vmatprep.subr.mxu0 0.0
        %1697 = vmatpush1.msra.mxu0 0.0
        %1698 = vmatprep.subr.mxu0 0.0
        %1699 = vmatpush1.msra.mxu0 0.0
        %1700 = vmatprep.subr.mxu0 0.0
        %1701 = vmatpush1.msra.mxu0 0.0
        %1702 = vmatprep.subr.mxu0 0.0
        %1703 = vmatpush1.msra.mxu0 0.0
        %1704 = vmatprep.subr.mxu0 0.0
        %1705 = vmatpush1.msra.mxu0 0.0
        %1706 = vmatprep.subr.mxu0 0.0
        %1707 = vmatpush1.msra.mxu0 0.0
        %1708 = vmatprep.subr.mxu0 0.0
        %1709 = vmatpush1.msra.mxu0 0.0
        %1710 = vmatprep.subr.mxu0 0.0
        %1711 = vmatpush1.msra.mxu0 0.0
        %1712 = vmatprep.subr.mxu0 0.0
        %1713 = vmatpush1.msra.mxu0 0.0
        %1714 = vmatprep.subr.mxu0 0.0
        %1715 = vmatpush1.msra.mxu0 0.0
        %1716 = vmatprep.subr.mxu0 0.0
        %1717 = vmatpush1.msra.mxu0 0.0
        %1718 = vmatprep.subr.mxu0 0.0
        %1719 = vmatpush1.msra.mxu0 0.0
        %1720 = vmatprep.subr.mxu0 0.0
        %1721 = vmatpush1.msra.mxu0 0.0
        %1722 = vmatprep.mubr.f32.mxu0 0.0
        %1723 = vmatmul.mubr.f32.gmra.mrb[0].mxu0 %v1656
        %v1724 = vpop.f32.mrb[0].mxu0
        %v1725 = vadd.f32 0.0, %v1724
        %v1726 = vpop.f32.mrb[0].mxu0
        %1727 = vdwg.mxu0
        %v1729 = vsel %vm539, %v1432, 0
        %1731 = vmatprep.subr.mxu0 0.0
        %1732 = vmatpush1.msra.mxu0 %v498
        %1733 = vmatprep.subr.mxu0 0.0
        %1734 = vmatpush1.msra.mxu0 %v499
        %1735 = vmatprep.subr.mxu0 0.0
        %1736 = vmatpush1.msra.mxu0 %v500
        %1737 = vmatprep.subr.mxu0 0.0
        %1738 = vmatpush1.msra.mxu0 %v501
        %1739 = vmatprep.subr.mxu0 0.0
        %1740 = vmatpush1.msra.mxu0 %v502
        %1741 = vmatprep.subr.mxu0 0.0
        %1742 = vmatpush1.msra.mxu0 %v503
        %1743 = vmatprep.subr.mxu0 0.0
        %1744 = vmatpush1.msra.mxu0 %v504
        %1745 = vmatprep.subr.mxu0 0.0
        %1746 = vmatpush1.msra.mxu0 %v505
        %1747 = vmatprep.subr.mxu0 0.0
        %1748 = vmatpush1.msra.mxu0 0.0
        %1749 = vmatprep.subr.mxu0 0.0
        %1750 = vmatpush1.msra.mxu0 0.0
        %1751 = vmatprep.subr.mxu0 0.0
        %1752 = vmatpush1.msra.mxu0 0.0
        %1753 = vmatprep.subr.mxu0 0.0
        %1754 = vmatpush1.msra.mxu0 0.0
        %1755 = vmatprep.subr.mxu0 0.0
        %1756 = vmatpush1.msra.mxu0 0.0
        %1757 = vmatprep.subr.mxu0 0.0
        %1758 = vmatpush1.msra.mxu0 0.0
        %1759 = vmatprep.subr.mxu0 0.0
        %1760 = vmatpush1.msra.mxu0 0.0
        %1761 = vmatprep.subr.mxu0 0.0
        %1762 = vmatpush1.msra.mxu0 0.0
        %1763 = vmatprep.subr.mxu0 0.0
        %1764 = vmatpush1.msra.mxu0 0.0
        %1765 = vmatprep.subr.mxu0 0.0
        %1766 = vmatpush1.msra.mxu0 0.0
        %1767 = vmatprep.subr.mxu0 0.0
        %1768 = vmatpush1.msra.mxu0 0.0
        %1769 = vmatprep.subr.mxu0 0.0
        %1770 = vmatpush1.msra.mxu0 0.0
        %1771 = vmatprep.subr.mxu0 0.0
        %1772 = vmatpush1.msra.mxu0 0.0
        %1773 = vmatprep.subr.mxu0 0.0
        %1774 = vmatpush1.msra.mxu0 0.0
        %1775 = vmatprep.subr.mxu0 0.0
        %1776 = vmatpush1.msra.mxu0 0.0
        %1777 = vmatprep.subr.mxu0 0.0
        %1778 = vmatpush1.msra.mxu0 0.0
        %1779 = vmatprep.subr.mxu0 0.0
        %1780 = vmatpush1.msra.mxu0 0.0
        %1781 = vmatprep.subr.mxu0 0.0
        %1782 = vmatpush1.msra.mxu0 0.0
        %1783 = vmatprep.subr.mxu0 0.0
        %1784 = vmatpush1.msra.mxu0 0.0
        %1785 = vmatprep.subr.mxu0 0.0
        %1786 = vmatpush1.msra.mxu0 0.0
        %1787 = vmatprep.subr.mxu0 0.0
        %1788 = vmatpush1.msra.mxu0 0.0
        %1789 = vmatprep.subr.mxu0 0.0
        %1790 = vmatpush1.msra.mxu0 0.0
        %1791 = vmatprep.subr.mxu0 0.0
        %1792 = vmatpush1.msra.mxu0 0.0
        %1793 = vmatprep.subr.mxu0 0.0
        %1794 = vmatpush1.msra.mxu0 0.0
        %1795 = vmatprep.mubr.f32.mxu0 0.0
        %1796 = vmatmul.mubr.f32.gmra.mrb[0].mxu0 %v1729
        %v1797 = vpop.f32.mrb[0].mxu0
        %v1798 = vadd.f32 0.0, %v1797
        %v1799 = vpop.f32.mrb[0].mxu0
        %1800 = vdwg.mxu0
        %v1802 = vsel %vm539, %v1433, 0
        %1804 = vmatprep.subr.mxu0 0.0
        %1805 = vmatpush1.msra.mxu0 %v506
        %1806 = vmatprep.subr.mxu0 0.0
        %1807 = vmatpush1.msra.mxu0 %v507
        %1808 = vmatprep.subr.mxu0 0.0
        %1809 = vmatpush1.msra.mxu0 %v508
        %1810 = vmatprep.subr.mxu0 0.0
        %1811 = vmatpush1.msra.mxu0 %v509
        %1812 = vmatprep.subr.mxu0 0.0
        %1813 = vmatpush1.msra.mxu0 %v510
        %1814 = vmatprep.subr.mxu0 0.0
        %1815 = vmatpush1.msra.mxu0 %v511
        %1816 = vmatprep.subr.mxu0 0.0
        %1817 = vmatpush1.msra.mxu0 %v512
        %1818 = vmatprep.subr.mxu0 0.0
        %1819 = vmatpush1.msra.mxu0 %v513
        %1820 = vmatprep.subr.mxu0 0.0
        %1821 = vmatpush1.msra.mxu0 0.0
        %1822 = vmatprep.subr.mxu0 0.0
        %1823 = vmatpush1.msra.mxu0 0.0
        %1824 = vmatprep.subr.mxu0 0.0
        %1825 = vmatpush1.msra.mxu0 0.0
        %1826 = vmatprep.subr.mxu0 0.0
        %1827 = vmatpush1.msra.mxu0 0.0
        %1828 = vmatprep.subr.mxu0 0.0
        %1829 = vmatpush1.msra.mxu0 0.0
        %1830 = vmatprep.subr.mxu0 0.0
        %1831 = vmatpush1.msra.mxu0 0.0
        %1832 = vmatprep.subr.mxu0 0.0
        %1833 = vmatpush1.msra.mxu0 0.0
        %1834 = vmatprep.subr.mxu0 0.0
        %1835 = vmatpush1.msra.mxu0 0.0
        %1836 = vmatprep.subr.mxu0 0.0
        %1837 = vmatpush1.msra.mxu0 0.0
        %1838 = vmatprep.subr.mxu0 0.0
        %1839 = vmatpush1.msra.mxu0 0.0
        %1840 = vmatprep.subr.mxu0 0.0
        %1841 = vmatpush1.msra.mxu0 0.0
        %1842 = vmatprep.subr.mxu0 0.0
        %1843 = vmatpush1.msra.mxu0 0.0
        %1844 = vmatprep.subr.mxu0 0.0
        %1845 = vmatpush1.msra.mxu0 0.0
        %1846 = vmatprep.subr.mxu0 0.0
        %1847 = vmatpush1.msra.mxu0 0.0
        %1848 = vmatprep.subr.mxu0 0.0
        %1849 = vmatpush1.msra.mxu0 0.0
        %1850 = vmatprep.subr.mxu0 0.0
        %1851 = vmatpush1.msra.mxu0 0.0
        %1852 = vmatprep.subr.mxu0 0.0
        %1853 = vmatpush1.msra.mxu0 0.0
        %1854 = vmatprep.subr.mxu0 0.0
        %1855 = vmatpush1.msra.mxu0 0.0
        %1856 = vmatprep.subr.mxu0 0.0
        %1857 = vmatpush1.msra.mxu0 0.0
        %1858 = vmatprep.subr.mxu0 0.0
        %1859 = vmatpush1.msra.mxu0 0.0
        %1860 = vmatprep.subr.mxu0 0.0
        %1861 = vmatpush1.msra.mxu0 0.0
        %1862 = vmatprep.subr.mxu0 0.0
        %1863 = vmatpush1.msra.mxu0 0.0
        %1864 = vmatprep.subr.mxu0 0.0
        %1865 = vmatpush1.msra.mxu0 0.0
        %1866 = vmatprep.subr.mxu0 0.0
        %1867 = vmatpush1.msra.mxu0 0.0
        %1868 = vmatprep.mubr.f32.mxu0 0.0
        %1869 = vmatmul.mubr.f32.gmra.mrb[0].mxu0 %v1802
        %v1870 = vpop.f32.mrb[0].mxu0
        %v1871 = vadd.f32 0.0, %v1870
        %v1872 = vpop.f32.mrb[0].mxu0
        %1873 = vdwg.mxu0
        %v1875 = vsel %vm539, %v1434, 0
        %1877 = vmatprep.subr.mxu0 0.0
        %1878 = vmatpush1.msra.mxu0 %v514
        %1879 = vmatprep.subr.mxu0 0.0
        %1880 = vmatpush1.msra.mxu0 %v515
        %1881 = vmatprep.subr.mxu0 0.0
        %1882 = vmatpush1.msra.mxu0 %v516
        %1883 = vmatprep.subr.mxu0 0.0
        %1884 = vmatpush1.msra.mxu0 %v517
        %1885 = vmatprep.subr.mxu0 0.0
        %1886 = vmatpush1.msra.mxu0 %v518
        %1887 = vmatprep.subr.mxu0 0.0
        %1888 = vmatpush1.msra.mxu0 %v519
        %1889 = vmatprep.subr.mxu0 0.0
        %1890 = vmatpush1.msra.mxu0 %v520
        %1891 = vmatprep.subr.mxu0 0.0
        %1892 = vmatpush1.msra.mxu0 %v521
        %1893 = vmatprep.subr.mxu0 0.0
        %1894 = vmatpush1.msra.mxu0 0.0
        %1895 = vmatprep.subr.mxu0 0.0
        %1896 = vmatpush1.msra.mxu0 0.0
        %1897 = vmatprep.subr.mxu0 0.0
        %1898 = vmatpush1.msra.mxu0 0.0
        %1899 = vmatprep.subr.mxu0 0.0
        %1900 = vmatpush1.msra.mxu0 0.0
        %1901 = vmatprep.subr.mxu0 0.0
        %1902 = vmatpush1.msra.mxu0 0.0
        %1903 = vmatprep.subr.mxu0 0.0
        %1904 = vmatpush1.msra.mxu0 0.0
        %1905 = vmatprep.subr.mxu0 0.0
        %1906 = vmatpush1.msra.mxu0 0.0
        %1907 = vmatprep.subr.mxu0 0.0
        %1908 = vmatpush1.msra.mxu0 0.0
        %1909 = vmatprep.subr.mxu0 0.0
        %1910 = vmatpush1.msra.mxu0 0.0
        %1911 = vmatprep.subr.mxu0 0.0
        %1912 = vmatpush1.msra.mxu0 0.0
        %1913 = vmatprep.subr.mxu0 0.0
        %1914 = vmatpush1.msra.mxu0 0.0
        %1915 = vmatprep.subr.mxu0 0.0
        %1916 = vmatpush1.msra.mxu0 0.0
        %1917 = vmatprep.subr.mxu0 0.0
        %1918 = vmatpush1.msra.mxu0 0.0
        %1919 = vmatprep.subr.mxu0 0.0
        %1920 = vmatpush1.msra.mxu0 0.0
        %1921 = vmatprep.subr.mxu0 0.0
        %1922 = vmatpush1.msra.mxu0 0.0
        %1923 = vmatprep.subr.mxu0 0.0
        %1924 = vmatpush1.msra.mxu0 0.0
        %1925 = vmatprep.subr.mxu0 0.0
        %1926 = vmatpush1.msra.mxu0 0.0
        %1927 = vmatprep.subr.mxu0 0.0
        %1928 = vmatpush1.msra.mxu0 0.0
        %1929 = vmatprep.subr.mxu0 0.0
        %1930 = vmatpush1.msra.mxu0 0.0
        %1931 = vmatprep.subr.mxu0 0.0
        %1932 = vmatpush1.msra.mxu0 0.0
        %1933 = vmatprep.subr.mxu0 0.0
        %1934 = vmatpush1.msra.mxu0 0.0
        %1935 = vmatprep.subr.mxu0 0.0
        %1936 = vmatpush1.msra.mxu0 0.0
        %1937 = vmatprep.subr.mxu0 0.0
        %1938 = vmatpush1.msra.mxu0 0.0
        %1939 = vmatprep.subr.mxu0 0.0
        %1940 = vmatpush1.msra.mxu0 0.0
        %1941 = vmatprep.mubr.f32.mxu0 0.0
        %1942 = vmatmul.mubr.f32.gmra.mrb[0].mxu0 %v1875
        %v1943 = vpop.f32.mrb[0].mxu0
        %v1944 = vadd.f32 0.0, %v1943
        %v1945 = vpop.f32.mrb[0].mxu0
        %1946 = vdwg.mxu0
        %v1948 = vsel %vm539, %v1435, 0
        %1950 = vmatprep.subr.mxu0 0.0
        %1951 = vmatpush1.msra.mxu0 %v522
        %1952 = vmatprep.subr.mxu0 0.0
        %1953 = vmatpush1.msra.mxu0 %v523
        %1954 = vmatprep.subr.mxu0 0.0
        %1955 = vmatpush1.msra.mxu0 %v524
        %1956 = vmatprep.subr.mxu0 0.0
        %1957 = vmatpush1.msra.mxu0 %v525
        %1958 = vmatprep.subr.mxu0 0.0
        %1959 = vmatpush1.msra.mxu0 %v526
        %1960 = vmatprep.subr.mxu0 0.0
        %1961 = vmatpush1.msra.mxu0 %v527
        %1962 = vmatprep.subr.mxu0 0.0
        %1963 = vmatpush1.msra.mxu0 %v528
        %1964 = vmatprep.subr.mxu0 0.0
        %1965 = vmatpush1.msra.mxu0 %v529
        %1966 = vmatprep.subr.mxu0 0.0
        %1967 = vmatpush1.msra.mxu0 0.0
        %1968 = vmatprep.subr.mxu0 0.0
        %1969 = vmatpush1.msra.mxu0 0.0
        %1970 = vmatprep.subr.mxu0 0.0
        %1971 = vmatpush1.msra.mxu0 0.0
        %1972 = vmatprep.subr.mxu0 0.0
        %1973 = vmatpush1.msra.mxu0 0.0
        %1974 = vmatprep.subr.mxu0 0.0
        %1975 = vmatpush1.msra.mxu0 0.0
        %1976 = vmatprep.subr.mxu0 0.0
        %1977 = vmatpush1.msra.mxu0 0.0
        %1978 = vmatprep.subr.mxu0 0.0
        %1979 = vmatpush1.msra.mxu0 0.0
        %1980 = vmatprep.subr.mxu0 0.0
        %1981 = vmatpush1.msra.mxu0 0.0
        %1982 = vmatprep.subr.mxu0 0.0
        %1983 = vmatpush1.msra.mxu0 0.0
        %1984 = vmatprep.subr.mxu0 0.0
        %1985 = vmatpush1.msra.mxu0 0.0
        %1986 = vmatprep.subr.mxu0 0.0
        %1987 = vmatpush1.msra.mxu0 0.0
        %1988 = vmatprep.subr.mxu0 0.0
        %1989 = vmatpush1.msra.mxu0 0.0
        %1990 = vmatprep.subr.mxu0 0.0
        %1991 = vmatpush1.msra.mxu0 0.0
        %1992 = vmatprep.subr.mxu0 0.0
        %1993 = vmatpush1.msra.mxu0 0.0
        %1994 = vmatprep.subr.mxu0 0.0
        %1995 = vmatpush1.msra.mxu0 0.0
        %1996 = vmatprep.subr.mxu0 0.0
        %1997 = vmatpush1.msra.mxu0 0.0
        %1998 = vmatprep.subr.mxu0 0.0
        %1999 = vmatpush1.msra.mxu0 0.0
        %2000 = vmatprep.subr.mxu0 0.0
        %2001 = vmatpush1.msra.mxu0 0.0
        %2002 = vmatprep.subr.mxu0 0.0
        %2003 = vmatpush1.msra.mxu0 0.0
        %2004 = vmatprep.subr.mxu0 0.0
        %2005 = vmatpush1.msra.mxu0 0.0
        %2006 = vmatprep.subr.mxu0 0.0
        %2007 = vmatpush1.msra.mxu0 0.0
        %2008 = vmatprep.subr.mxu0 0.0
        %2009 = vmatpush1.msra.mxu0 0.0
        %2010 = vmatprep.subr.mxu0 0.0
        %2011 = vmatpush1.msra.mxu0 0.0
        %2012 = vmatprep.subr.mxu0 0.0
        %2013 = vmatpush1.msra.mxu0 0.0
        %2014 = vmatprep.mubr.f32.mxu0 0.0
        %2015 = vmatmul.mubr.f32.gmra.mrb[0].mxu0 %v1948
        %v2016 = vpop.f32.mrb[0].mxu0
        %v2017 = vadd.f32 0.0, %v2016
        %v2018 = vpop.f32.mrb[0].mxu0
        %2019 = vdwg.mxu0
        %v2020 = vmul.f32 %v1506, %v530
        %v2021 = vmul.f32 %v1579, %v530
        %v2022 = vmul.f32 %v1652, %v530
        %v2023 = vmul.f32 %v1725, %v530
        %v2024 = vmul.f32 %v1798, %v530
        %v2025 = vmul.f32 %v1871, %v530
        %v2026 = vmul.f32 %v1944, %v530
        %v2027 = vmul.f32 %v2017, %v530
        %2028 = vst.msk [vmem:[%s393] sm:$0xff] %vm539, %v2020
        %2029 = vst.msk [vmem:[%s393 + $0x8] sm:$0xff] %vm539, %v2021
        %2030 = vst.msk [vmem:[%s393 + $0x10] sm:$0xff] %vm539, %v2022
        %2031 = vst.msk [vmem:[%s393 + $0x18] sm:$0xff] %vm539, %v2023
        %2032 = vst.msk [vmem:[%s393 + $0x20] sm:$0xff] %vm539, %v2024
        %2033 = vst.msk [vmem:[%s393 + $0x28] sm:$0xff] %vm539, %v2025
        %2034 = vst.msk [vmem:[%s393 + $0x30] sm:$0xff] %vm539, %v2026
        %2035 = vst.msk [vmem:[%s393 + $0x38] sm:$0xff] %vm539, %v2027
        %s2036 = sand.u32 %s166, 1
        %s2037 = scalar_lea.sflag [#allocation4], %s2036
        %s2038 = sand.u32 %s166, 1
        %s2039 = smul.addr %s2038, 64
        %s2040 = scalar_lea.vmem [#allocation11], %s2039
        // Predicated region
        $region61: #{tpu_custom_call.1} parent=39 // pred_check
          %p2041 = pneg %p176
        $region62: #{tpu_custom_call.1} parent=39 // pred_check_branch
          %2043 = sbr.rel (%p2041) target = $region64
        $region63: #{tpu_custom_call.1} parent=39 // pred_region
          %s2045 = ssub.s32 1024, 1024
          %2046 = vsyncadd %s2037, %s2045
          %s2047 = smul.addr %s28, 8
          %s2048 = smul.addr %s2047, 128
          %s2049 = scalar_lea.hbm %s5, %s2048
          %s2050 = sshll.u32 %s2040, 4
          %s2051 = int_to_ptr.vmem [resolvable:$true] %s2050
          %2056 = dma.vmem_to_hbm [thread:$0]  %s2051, 1024, %s2049, %s2037, 128, 128, 8
        $region64: #{tpu_custom_call.1} parent=39 // pred_fallthru
          _
      $region40: #{tpu_custom_call.1} parent=5 // pred_fallthru
        _
      %p2057 = scmp.le.s32.totalorder 2, %s23
      // Predicated region
      $region65: #{tpu_custom_call.1} parent=5 // pred_check
        %p2058 = pneg %p2057
      $region66: #{tpu_custom_call.1} parent=5 // pred_check_branch
        %2060 = sbr.rel (%p2058) target = $region68
      $region67: #{tpu_custom_call.1} parent=5 // pred_region
        %s2061 = ssub.s32 %s23, 2
        // Predicated region
        $region69: #{tpu_custom_call.1} parent=67 // pred_check
          %p2062 = pneg %p182
        $region70: #{tpu_custom_call.1} parent=67 // pred_check_branch
          %2064 = sbr.rel (%p2062) target = $region72
        $region71: #{tpu_custom_call.1} parent=67 // pred_region
          %s2065 = sand.u32 %s167, 1
          %s2066 = scalar_lea.sflag [#allocation4], %s2065
          %s2067 = sand.u32 %s167, 1
          %s2068 = smul.addr %s2067, 64
          %s2069 = scalar_lea.vmem [#allocation11], %s2068
          %2070 = dma.done %s2066, 1024
        $region72: #{tpu_custom_call.1} parent=67 // pred_fallthru
          _
      $region68: #{tpu_custom_call.1} parent=5 // pred_fallthru
        _
    $region6: #{tpu_custom_call.1} parent=1 // loop_footer
      %s27 = sadd.s32 1, %s23
    $region7: #{tpu_custom_call.1} parent=1 // loop_footer_branch
      %22 = sbr.rel target = $region3
    $region8: #{tpu_custom_call.1} parent=1 // loop_exit
      _
    %2071 = vsyncpa [#allocation3], 1
    %s2072 = scalar_lea.sflag [#allocation3], 1
    %2073 = vsyncpa %s2072, 1
    %2074 = vsyncpa [#allocation6], 1
    %s2075 = scalar_lea.sflag [#allocation6], 1
    %2076 = vsyncpa %s2075, 1
    %2077 = vsyncpa [#allocation9], 1
    %s2078 = scalar_lea.sflag [#allocation9], 1
    %2079 = vsyncpa %s2078, 1
    %2080 = vsyncpa [#allocation4], 1
    %s2081 = scalar_lea.sflag [#allocation4], 1
    %2082 = vsyncpa %s2081, 1

</llo_original>
